<compile_context>
chip_gen: v5e
topology: v5e:2x2
jax: 0.10.0
libtpu: 0.0.40
codegen_flags: <defaults>
</compile_context>

<pallas_src>
import functools

import jax
import jax.numpy as jnp
from jax import lax
from jax.experimental import pallas as pl
from jax.experimental.pallas import tpu as pltpu

CHUNK_SIZE = 640            # samples per streaming chunk
HOP = 160                   # samples per feature frame (CHUNK_SIZE % HOP == 0)
INPUT_FEATURE_SIZE = 240
ENC_HIDDEN = 256
DECODER_FEATURE_SIZE = 128

K_PAD = 256                 # padded contraction width (160 and 240 both pad to 256)
LANE = 128                  # lane-dense output granularity


def _round_up(x, m):
    return (x + m - 1) // m * m


# ---------------------------------------------------------------------------
# Kernel A: fused per-frame pipeline (bf16 operands, f32 accumulation)
#   frames (rows, 256) -> feature-extractor linear+ReLU (256, pad of 240)
#                      -> encoder MLP 256->256->128 (ReLU)
#                      -> CTC linear 128 -> vocab_pad (no bias)
# outputs: encoder features (rows, 128) and CTC logits (rows, vocab_pad), both f32
# ---------------------------------------------------------------------------
def _frame_pipeline_kernel(frames_ref, wfe_ref, bfe_ref, w1_ref, b1_ref,
                           w2_ref, b2_ref, wctc_ref, enc_ref, ctc_ref):
    x = frames_ref[...]                                                   # (TM, 256) bf16
    h0 = jnp.maximum(
        jnp.dot(x, wfe_ref[...], preferred_element_type=jnp.float32) + bfe_ref[...], 0.0)
    h1 = jnp.maximum(
        jnp.dot(h0.astype(jnp.bfloat16), w1_ref[...],
                preferred_element_type=jnp.float32) + b1_ref[...], 0.0)
    h2 = jnp.maximum(
        jnp.dot(h1.astype(jnp.bfloat16), w2_ref[...],
                preferred_element_type=jnp.float32) + b2_ref[...], 0.0)
    enc_ref[...] = h2                                                     # (TM, 128) f32
    ctc_ref[...] = jnp.dot(h2.astype(jnp.bfloat16), wctc_ref[...],
                           preferred_element_type=jnp.float32)            # (TM, Vp) f32


def frame_pipeline(frames, params, vocab_size, tm=256):
    n, hop = frames.shape
    assert hop == HOP
    v_pad = _round_up(vocab_size, LANE)
    n_pad = _round_up(n, tm)

    # Zero-pad ragged dims to MXU-friendly widths, pad rows to the tile size,
    # and cast matmul operands to bf16 (accumulation stays f32 in-kernel).
    frames_p = jnp.pad(frames, ((0, n_pad - n), (0, K_PAD - hop))).astype(jnp.bfloat16)
    w_fe = jnp.pad(params["w_fe"],
                   ((0, K_PAD - hop), (0, K_PAD - INPUT_FEATURE_SIZE))).astype(jnp.bfloat16)
    b_fe = jnp.pad(params["b_fe"], ((0, 0), (0, K_PAD - INPUT_FEATURE_SIZE)))
    w1 = jnp.pad(params["w1"],
                 ((0, K_PAD - INPUT_FEATURE_SIZE), (0, 0))).astype(jnp.bfloat16)
    b1 = params["b1"]
    w2 = params["w2"].astype(jnp.bfloat16)
    b2 = params["b2"]
    w_ctc = jnp.pad(params["w_ctc"],
                    ((0, 0), (0, v_pad - vocab_size))).astype(jnp.bfloat16)

    full = lambda i: (0, 0)
    out_shape = (jax.ShapeDtypeStruct((n_pad, DECODER_FEATURE_SIZE), jnp.float32),
                 jax.ShapeDtypeStruct((n_pad, v_pad), jnp.float32))
    enc, ctc = pl.pallas_call(
        _frame_pipeline_kernel,
        out_shape=out_shape,
        grid_spec=pltpu.PrefetchScalarGridSpec(
            num_scalar_prefetch=0,
            grid=(n_pad // tm,),
            in_specs=[
                pl.BlockSpec((tm, K_PAD), lambda i: (i, 0)),
                pl.BlockSpec((K_PAD, K_PAD), full),
                pl.BlockSpec((1, K_PAD), full),
                pl.BlockSpec((K_PAD, ENC_HIDDEN), full),
                pl.BlockSpec((1, ENC_HIDDEN), full),
                pl.BlockSpec((ENC_HIDDEN, DECODER_FEATURE_SIZE), full),
                pl.BlockSpec((1, DECODER_FEATURE_SIZE), full),
                pl.BlockSpec((DECODER_FEATURE_SIZE, v_pad), full),
            ],
            out_specs=[
                pl.BlockSpec((tm, DECODER_FEATURE_SIZE), lambda i: (i, 0)),
                pl.BlockSpec((tm, v_pad), lambda i: (i, 0)),
            ],
        ),
        compiler_params=pltpu.CompilerParams(dimension_semantics=("parallel",)),
    )(frames_p, w_fe, b_fe, w1, b1, w2, b2, w_ctc)
    return enc[:n], ctc[:n, :vocab_size]


# ---------------------------------------------------------------------------
# Kernel B: batched attention decoder (Bt batch elements per grid step)
#   Q = teacher @ W_emb ; scores = Q E^T / sqrt(d), masked by encode_len
#   ctx = softmax(scores) @ E ; logits = Q @ W_o[:D] + ctx @ W_o[D:] + b_o ; log-softmax
# encode_len arrives as a (Bt, 1) int32 VMEM block; vocab is padded to 128 lanes and
# padded logit columns are killed via a -1e30 bias so the log-softmax is exact.
# ---------------------------------------------------------------------------
def _att_decoder_kernel(enc_len_ref, teacher_ref, enc_ref,
                        wemb_ref, woq_ref, woc_ref, bo_ref, out_ref):
    teacher = teacher_ref[...]                                           # (Bt, L, Vp)
    e = enc_ref[...]                                                     # (Bt, T, D)
    Bt, L, Vp = teacher.shape
    D = e.shape[-1]

    # teacher embedding: (Bt*L, Vp) @ (Vp, D)
    q2 = jnp.dot(teacher.reshape(Bt * L, Vp), wemb_ref[...],
                 preferred_element_type=jnp.float32)                     # (Bt*L, D)
    q = q2.reshape(Bt, L, D)

    # attention scores, masked by encode_len
    scores = jnp.einsum('bld,btd->blt', q, e,
                        preferred_element_type=jnp.float32)
    scores = scores * (1.0 / jnp.sqrt(jnp.float32(DECODER_FEATURE_SIZE)))
    enc_len = enc_len_ref[...]                                           # (Bt, 1) int32
    kv_idx = lax.broadcasted_iota(jnp.int32, scores.shape, 2)
    scores = jnp.where(kv_idx < enc_len.reshape(Bt, 1, 1), scores,
                       jnp.float32(-1e30))

    m = jnp.max(scores, axis=-1, keepdims=True)
    p = jnp.exp(scores - m)
    attn = p * pl.reciprocal(jnp.sum(p, axis=-1, keepdims=True), approx=False)
    ctx = jnp.einsum('blt,btd->bld', attn, e,
                     preferred_element_type=jnp.float32)                 # (Bt, L, D)

    # output projection with split weight (avoids a lane-dim concat)
    logits = (jnp.dot(q2, woq_ref[...], preferred_element_type=jnp.float32)
              + jnp.dot(ctx.reshape(Bt * L, D), woc_ref[...],
                        preferred_element_type=jnp.float32)
              + bo_ref[...])                                             # (Bt*L, Vp)

    # log-softmax over vocab (padded columns carry a -1e30 bias -> vanish)
    lmax = jnp.max(logits, axis=-1, keepdims=True)
    z = logits - lmax
    logz = jnp.log(jnp.sum(jnp.exp(z), axis=-1, keepdims=True))
    out_ref[...] = (z - logz).reshape(Bt, L, Vp)


def attention_decoder(encode_feature, encode_len, teacher, params, vocab_size, bt=None):
    B, T, D = encode_feature.shape
    _, L, V = teacher.shape
    assert V == vocab_size and D == DECODER_FEATURE_SIZE
    v_pad = _round_up(vocab_size, LANE)
    if bt is None:
        bt = B if B <= 8 else 8
    b_pad = _round_up(B, bt)

    teacher_p = jnp.pad(teacher, ((0, b_pad - B), (0, 0), (0, v_pad - V)))
    enc_p = jnp.pad(encode_feature, ((0, b_pad - B), (0, 0), (0, 0)))
    len_p = jnp.pad(encode_len.astype(jnp.int32), (0, b_pad - B)).reshape(b_pad, 1)

    w_emb = jnp.pad(params["w_emb"], ((0, v_pad - V), (0, 0)))
    w_o = params["w_o"]                                                  # (2D, V)
    w_oq = jnp.pad(w_o[:D], ((0, 0), (0, v_pad - V)))
    w_oc = jnp.pad(w_o[D:], ((0, 0), (0, v_pad - V)))
    b_o = jnp.pad(params["b_o"], ((0, 0), (0, v_pad - V)),
                  constant_values=-1e30)

    full = lambda b: (0, 0)
    out = pl.pallas_call(
        _att_decoder_kernel,
        out_shape=jax.ShapeDtypeStruct((b_pad, L, v_pad), jnp.float32),
        grid_spec=pltpu.PrefetchScalarGridSpec(
            num_scalar_prefetch=0,
            grid=(b_pad // bt,),
            in_specs=[
                pl.BlockSpec((bt, 1), lambda b: (b, 0)),
                pl.BlockSpec((bt, L, v_pad), lambda b: (b, 0, 0)),
                pl.BlockSpec((bt, T, D), lambda b: (b, 0, 0)),
                pl.BlockSpec((v_pad, D), full),
                pl.BlockSpec((D, v_pad), full),
                pl.BlockSpec((D, v_pad), full),
                pl.BlockSpec((1, v_pad), full),
            ],
            out_specs=pl.BlockSpec((bt, L, v_pad), lambda b: (b, 0, 0)),
        ),
        compiler_params=pltpu.CompilerParams(dimension_semantics=("parallel",)),
    )(len_p, teacher_p, enc_p, w_emb, w_oq, w_oc, b_o)
    return out[:B, :, :vocab_size]


# ---------------------------------------------------------------------------
# Parameter init (deterministic, synthetic) — stored at natural (unpadded) shapes
# ---------------------------------------------------------------------------
def init_params(vocab_size, key):
    keys = jax.random.split(key, 8)
    def lin(k, fan_in, shape):
        return jax.random.normal(k, shape, jnp.float32) / jnp.sqrt(jnp.float32(fan_in))
    return {
        "w_fe": lin(keys[0], HOP, (HOP, INPUT_FEATURE_SIZE)),
        "b_fe": jnp.zeros((1, INPUT_FEATURE_SIZE), jnp.float32),
        "w1": lin(keys[1], INPUT_FEATURE_SIZE, (INPUT_FEATURE_SIZE, ENC_HIDDEN)),
        "b1": jnp.zeros((1, ENC_HIDDEN), jnp.float32),
        "w2": lin(keys[2], ENC_HIDDEN, (ENC_HIDDEN, DECODER_FEATURE_SIZE)),
        "b2": jnp.zeros((1, DECODER_FEATURE_SIZE), jnp.float32),
        "w_ctc": lin(keys[3], DECODER_FEATURE_SIZE, (DECODER_FEATURE_SIZE, vocab_size)),
        "w_emb": lin(keys[4], vocab_size, (vocab_size, DECODER_FEATURE_SIZE)),
        "w_o": lin(keys[5], 2 * DECODER_FEATURE_SIZE,
                   (2 * DECODER_FEATURE_SIZE, vocab_size)),
        "b_o": jnp.zeros((1, vocab_size), jnp.float32),
    }


# ---------------------------------------------------------------------------
# Full forward (glue in plain JAX, hot paths in Pallas)
# ---------------------------------------------------------------------------
def asr_forward(params, audio, audio_lengths, teacher, teacher_lengths, vocab_size):
    B, S = audio.shape
    # chunking: pad to a multiple of CHUNK_SIZE (equivalent to torch split + per-chunk pad,
    # since feature frames are non-overlapping and CHUNK_SIZE % HOP == 0)
    n_chunks = -(-S // CHUNK_SIZE)
    S_pad = n_chunks * CHUNK_SIZE
    audio_p = jnp.pad(audio, ((0, 0), (0, S_pad - S)))

    # per-chunk valid lengths -> per-chunk frame counts -> total feature length
    chunk_idx = jnp.arange(n_chunks, dtype=jnp.int32)
    item_lengths = jnp.clip(audio_lengths[:, None] - chunk_idx[None, :] * CHUNK_SIZE,
                            0, CHUNK_SIZE)                               # (B, n_chunks)
    # TODO(synk): audio_lengths not divisible by HOP drop the partial final frame here;
    #             the reference FeatureExtractor's exact rounding is not recoverable.
    audio_len = jnp.sum(item_lengths // HOP, axis=1).astype(jnp.int32)   # (B,)

    # frame the audio: (B, T, HOP) -> (B*T, HOP)
    T = S_pad // HOP
    frames = audio_p.reshape(B * T, HOP)

    # Kernel A: feature extractor + encoder MLP + CTC projection
    enc_flat, ctc_flat = frame_pipeline(frames, params, vocab_size, tm=256)
    encode_feature = enc_flat.reshape(B, T, DECODER_FEATURE_SIZE)
    ctc_output = ctc_flat.reshape(B, T, vocab_size)
    encode_len = audio_len                                               # encoder keeps frame rate

    # Kernel B: attention decoder (teacher forcing)
    att_output = attention_decoder(encode_feature, encode_len, teacher, params, vocab_size)
    # TODO(synk): teacher_lengths is accepted but not used to mask decoder steps
    #             (the reference Decoder internals are unavailable).
    return encode_len, ctc_output, att_output


if __name__ == "__main__":
    VOCAB = 16
    B = 2
    S = 2 * CHUNK_SIZE          # 1280 samples
    L_TEACHER = 8

    key = jax.random.PRNGKey(0)
    k_param, k_audio, k_teacher = jax.random.split(key, 3)

    params = init_params(VOCAB, k_param)
    audio = jax.random.normal(k_audio, (B, S), jnp.float32)
    audio_lengths = jnp.array([1280, 960], jnp.int32)
    teacher = jax.nn.one_hot(
        jax.random.randint(k_teacher, (B, L_TEACHER), 0, VOCAB), VOCAB, dtype=jnp.float32)
    teacher_lengths = jnp.array([8, 6], jnp.int32)

    fwd = jax.jit(functools.partial(asr_forward, vocab_size=VOCAB))
    encode_len, ctc_output, att_output = fwd(params, audio, audio_lengths,
                                             teacher, teacher_lengths)
    jax.block_until_ready((encode_len, ctc_output, att_output))

    assert encode_len.shape == (B,)
    assert ctc_output.shape == (B, S // HOP, VOCAB)
    assert att_output.shape == (B, L_TEACHER, VOCAB)
    assert bool(jnp.all(jnp.isfinite(ctc_output)))
    assert bool(jnp.all(jnp.isfinite(att_output)))
    print("KERNEL_OK")
</pallas_src>

<mosaic_0001>
module attributes {stable_mosaic.version = 11 : i64} {
  func.func @_frame_pipeline_kernel(%arg0: i32, %arg1: memref<256x256xbf16, #tpu.memory_space<vmem>>, %arg2: memref<256x256xbf16, #tpu.memory_space<vmem>>, %arg3: memref<1x256xf32, #tpu.memory_space<vmem>>, %arg4: memref<256x256xbf16, #tpu.memory_space<vmem>>, %arg5: memref<1x256xf32, #tpu.memory_space<vmem>>, %arg6: memref<256x128xbf16, #tpu.memory_space<vmem>>, %arg7: memref<1x128xf32, #tpu.memory_space<vmem>>, %arg8: memref<128x128xbf16, #tpu.memory_space<vmem>>, %arg9: memref<256x128xf32, #tpu.memory_space<vmem>>, %arg10: memref<256x128xf32, #tpu.memory_space<vmem>>) attributes {dimension_semantics = [#tpu.dimension_semantics<parallel>], iteration_bounds = array<i64: 1>, scalar_prefetch = 0 : i64, scratch_operands = 0 : i64, tpu.core_type = #tpu.core_type<tc>, window_params = [{transform_indices = @transform_0, window_bounds = array<i64: 256, 256>}, {pipeline_mode = #tpu.pipeline_mode<synchronous>, transform_indices = @transform_1, window_bounds = array<i64: 256, 256>}, {pipeline_mode = #tpu.pipeline_mode<synchronous>, transform_indices = @transform_2, window_bounds = array<i64: 1, 256>}, {pipeline_mode = #tpu.pipeline_mode<synchronous>, transform_indices = @transform_3, window_bounds = array<i64: 256, 256>}, {pipeline_mode = #tpu.pipeline_mode<synchronous>, transform_indices = @transform_4, window_bounds = array<i64: 1, 256>}, {pipeline_mode = #tpu.pipeline_mode<synchronous>, transform_indices = @transform_5, window_bounds = array<i64: 256, 128>}, {pipeline_mode = #tpu.pipeline_mode<synchronous>, transform_indices = @transform_6, window_bounds = array<i64: 1, 128>}, {pipeline_mode = #tpu.pipeline_mode<synchronous>, transform_indices = @transform_7, window_bounds = array<i64: 128, 128>}, {transform_indices = @transform_8, window_bounds = array<i64: 256, 128>}, {transform_indices = @transform_9, window_bounds = array<i64: 256, 128>}]} {
    %c0 = arith.constant 0 : index
    %c0_0 = arith.constant 0 : index
    %0 = vector.load %arg1[%c0, %c0_0] : memref<256x256xbf16, #tpu.memory_space<vmem>>, vector<256x256xbf16>
    %c0_1 = arith.constant 0 : index
    %c0_2 = arith.constant 0 : index
    %1 = vector.load %arg2[%c0_1, %c0_2] : memref<256x256xbf16, #tpu.memory_space<vmem>>, vector<256x256xbf16>
    %cst = arith.constant dense<0.000000e+00> : vector<256x256xf32>
    %2 = tpu.matmul %0, %1, %cst {dimension_numbers = #tpu.dot_dimension_numbers<[1], [0], [0], [1], [0, 0, 1, 1], [], []>} : vector<256x256xbf16>, vector<256x256xbf16>, vector<256x256xf32> -> vector<256x256xf32>
    %c0_3 = arith.constant 0 : index
    %c0_4 = arith.constant 0 : index
    %3 = vector.load %arg3[%c0_3, %c0_4] : memref<1x256xf32, #tpu.memory_space<vmem>>, vector<1x256xf32>
    %4 = vector.broadcast %3 : vector<1x256xf32> to vector<256x256xf32>
    %5 = arith.addf %2, %4 : vector<256x256xf32>
    %cst_5 = arith.constant 0.000000e+00 : f32
    %6 = vector.broadcast %cst_5 : f32 to vector<256x256xf32>
    %7 = arith.maximumf %5, %6 : vector<256x256xf32>
    %8 = arith.truncf %7 : vector<256x256xf32> to vector<256x256xbf16>
    %c0_6 = arith.constant 0 : index
    %c0_7 = arith.constant 0 : index
    %9 = vector.load %arg4[%c0_6, %c0_7] : memref<256x256xbf16, #tpu.memory_space<vmem>>, vector<256x256xbf16>
    %cst_8 = arith.constant dense<0.000000e+00> : vector<256x256xf32>
    %10 = tpu.matmul %8, %9, %cst_8 {dimension_numbers = #tpu.dot_dimension_numbers<[1], [0], [0], [1], [0, 0, 1, 1], [], []>} : vector<256x256xbf16>, vector<256x256xbf16>, vector<256x256xf32> -> vector<256x256xf32>
    %c0_9 = arith.constant 0 : index
    %c0_10 = arith.constant 0 : index
    %11 = vector.load %arg5[%c0_9, %c0_10] : memref<1x256xf32, #tpu.memory_space<vmem>>, vector<1x256xf32>
    %12 = vector.broadcast %11 : vector<1x256xf32> to vector<256x256xf32>
    %13 = arith.addf %10, %12 : vector<256x256xf32>
    %cst_11 = arith.constant 0.000000e+00 : f32
    %14 = vector.broadcast %cst_11 : f32 to vector<256x256xf32>
    %15 = arith.maximumf %13, %14 : vector<256x256xf32>
    %16 = arith.truncf %15 : vector<256x256xf32> to vector<256x256xbf16>
    %c0_12 = arith.constant 0 : index
    %c0_13 = arith.constant 0 : index
    %17 = vector.load %arg6[%c0_12, %c0_13] : memref<256x128xbf16, #tpu.memory_space<vmem>>, vector<256x128xbf16>
    %cst_14 = arith.constant dense<0.000000e+00> : vector<256x128xf32>
    %18 = tpu.matmul %16, %17, %cst_14 {dimension_numbers = #tpu.dot_dimension_numbers<[1], [0], [0], [1], [0, 0, 1, 1], [], []>} : vector<256x256xbf16>, vector<256x128xbf16>, vector<256x128xf32> -> vector<256x128xf32>
    %c0_15 = arith.constant 0 : index
    %c0_16 = arith.constant 0 : index
    %19 = vector.load %arg7[%c0_15, %c0_16] : memref<1x128xf32, #tpu.memory_space<vmem>>, vector<1x128xf32>
    %20 = vector.broadcast %19 : vector<1x128xf32> to vector<256x128xf32>
    %21 = arith.addf %18, %20 : vector<256x128xf32>
    %cst_17 = arith.constant 0.000000e+00 : f32
    %22 = vector.broadcast %cst_17 : f32 to vector<256x128xf32>
    %23 = arith.maximumf %21, %22 : vector<256x128xf32>
    %c0_18 = arith.constant 0 : index
    %c0_19 = arith.constant 0 : index
    %24 = vector.load %arg9[%c0_18, %c0_19] : memref<256x128xf32, #tpu.memory_space<vmem>>, vector<256x128xf32>
    tpu.vector_store %arg9[%c0_18, %c0_19], %23 {strides = array<i32>} : memref<256x128xf32, #tpu.memory_space<vmem>>, vector<256x128xf32>,
    %25 = arith.truncf %23 : vector<256x128xf32> to vector<256x128xbf16>
    %c0_20 = arith.constant 0 : index
    %c0_21 = arith.constant 0 : index
    %26 = vector.load %arg8[%c0_20, %c0_21] : memref<128x128xbf16, #tpu.memory_space<vmem>>, vector<128x128xbf16>
    %cst_22 = arith.constant dense<0.000000e+00> : vector<256x128xf32>
    %27 = tpu.matmul %25, %26, %cst_22 {dimension_numbers = #tpu.dot_dimension_numbers<[1], [0], [0], [1], [0, 0, 1, 1], [], []>} : vector<256x128xbf16>, vector<128x128xbf16>, vector<256x128xf32> -> vector<256x128xf32>
    %c0_23 = arith.constant 0 : index
    %c0_24 = arith.constant 0 : index
    %28 = vector.load %arg10[%c0_23, %c0_24] : memref<256x128xf32, #tpu.memory_space<vmem>>, vector<256x128xf32>
    tpu.vector_store %arg10[%c0_23, %c0_24], %27 {strides = array<i32>} : memref<256x128xf32, #tpu.memory_space<vmem>>, vector<256x128xf32>,
    return
  }
  func.func @transform_0(%arg0: i32) -> (i32, i32) {
    %c0_i32 = arith.constant 0 : i32
    %c0_i32_0 = arith.constant 0 : i32
    return %arg0, %c0_i32 : i32, i32
  }
  func.func @transform_1(%arg0: i32) -> (i32, i32) {
    %c0_i32 = arith.constant 0 : i32
    %c0_i32_0 = arith.constant 0 : i32
    %c0_i32_1 = arith.constant 0 : i32
    return %c0_i32, %c0_i32_0 : i32, i32
  }
  func.func @transform_2(%arg0: i32) -> (i32, i32) {
    %c0_i32 = arith.constant 0 : i32
    %c0_i32_0 = arith.constant 0 : i32
    %c0_i32_1 = arith.constant 0 : i32
    return %c0_i32, %c0_i32_0 : i32, i32
  }
  func.func @transform_3(%arg0: i32) -> (i32, i32) {
    %c0_i32 = arith.constant 0 : i32
    %c0_i32_0 = arith.constant 0 : i32
    %c0_i32_1 = arith.constant 0 : i32
    return %c0_i32, %c0_i32_0 : i32, i32
  }
  func.func @transform_4(%arg0: i32) -> (i32, i32) {
    %c0_i32 = arith.constant 0 : i32
    %c0_i32_0 = arith.constant 0 : i32
    %c0_i32_1 = arith.constant 0 : i32
    return %c0_i32, %c0_i32_0 : i32, i32
  }
  func.func @transform_5(%arg0: i32) -> (i32, i32) {
    %c0_i32 = arith.constant 0 : i32
    %c0_i32_0 = arith.constant 0 : i32
    %c0_i32_1 = arith.constant 0 : i32
    return %c0_i32, %c0_i32_0 : i32, i32
  }
  func.func @transform_6(%arg0: i32) -> (i32, i32) {
    %c0_i32 = arith.constant 0 : i32
    %c0_i32_0 = arith.constant 0 : i32
    %c0_i32_1 = arith.constant 0 : i32
    return %c0_i32, %c0_i32_0 : i32, i32
  }
  func.func @transform_7(%arg0: i32) -> (i32, i32) {
    %c0_i32 = arith.constant 0 : i32
    %c0_i32_0 = arith.constant 0 : i32
    %c0_i32_1 = arith.constant 0 : i32
    return %c0_i32, %c0_i32_0 : i32, i32
  }
  func.func @transform_8(%arg0: i32) -> (i32, i32) {
    %c0_i32 = arith.constant 0 : i32
    %c0_i32_0 = arith.constant 0 : i32
    return %arg0, %c0_i32 : i32, i32
  }
  func.func @transform_9(%arg0: i32) -> (i32, i32) {
    %c0_i32 = arith.constant 0 : i32
    %c0_i32_0 = arith.constant 0 : i32
    return %arg0, %c0_i32 : i32, i32
  }
}

module attributes {stable_mosaic.version = 11 : i64} {
  func.func @_att_decoder_kernel(%arg0: i32, %arg1: memref<2x1xi32, #tpu.memory_space<vmem>>, %arg2: memref<2x8x128xf32, #tpu.memory_space<vmem>>, %arg3: memref<2x8x128xf32, #tpu.memory_space<vmem>>, %arg4: memref<128x128xf32, #tpu.memory_space<vmem>>, %arg5: memref<128x128xf32, #tpu.memory_space<vmem>>, %arg6: memref<128x128xf32, #tpu.memory_space<vmem>>, %arg7: memref<1x128xf32, #tpu.memory_space<vmem>>, %arg8: memref<2x8x128xf32, #tpu.memory_space<vmem>>) attributes {dimension_semantics = [#tpu.dimension_semantics<parallel>], iteration_bounds = array<i64: 1>, scalar_prefetch = 0 : i64, scratch_operands = 0 : i64, tpu.core_type = #tpu.core_type<tc>, window_params = [{transform_indices = @transform_0, window_bounds = array<i64: 2, 1>}, {transform_indices = @transform_1, window_bounds = array<i64: 2, 8, 128>}, {transform_indices = @transform_2, window_bounds = array<i64: 2, 8, 128>}, {pipeline_mode = #tpu.pipeline_mode<synchronous>, transform_indices = @transform_3, window_bounds = array<i64: 128, 128>}, {pipeline_mode = #tpu.pipeline_mode<synchronous>, transform_indices = @transform_4, window_bounds = array<i64: 128, 128>}, {pipeline_mode = #tpu.pipeline_mode<synchronous>, transform_indices = @transform_5, window_bounds = array<i64: 128, 128>}, {pipeline_mode = #tpu.pipeline_mode<synchronous>, transform_indices = @transform_6, window_bounds = array<i64: 1, 128>}, {transform_indices = @transform_7, window_bounds = array<i64: 2, 8, 128>}]} {
    %c0 = arith.constant 0 : index
    %c0_0 = arith.constant 0 : index
    %c0_1 = arith.constant 0 : index
    %0 = vector.load %arg2[%c0, %c0_0, %c0_1] : memref<2x8x128xf32, #tpu.memory_space<vmem>>, vector<2x8x128xf32>
    %c0_2 = arith.constant 0 : index
    %c0_3 = arith.constant 0 : index
    %c0_4 = arith.constant 0 : index
    %1 = vector.load %arg3[%c0_2, %c0_3, %c0_4] : memref<2x8x128xf32, #tpu.memory_space<vmem>>, vector<2x8x128xf32>
    %2 = vector.shape_cast %0 : vector<2x8x128xf32> to vector<16x128xf32>
    %c0_5 = arith.constant 0 : index
    %c0_6 = arith.constant 0 : index
    %3 = vector.load %arg4[%c0_5, %c0_6] : memref<128x128xf32, #tpu.memory_space<vmem>>, vector<128x128xf32>
    %cst = arith.constant dense<0.000000e+00> : vector<16x128xf32>
    %4 = tpu.matmul %2, %3, %cst {dimension_numbers = #tpu.dot_dimension_numbers<[1], [0], [0], [1], [0, 0, 1, 1], [], []>} : vector<16x128xf32>, vector<128x128xf32>, vector<16x128xf32> -> vector<16x128xf32>
    %5 = vector.shape_cast %4 : vector<16x128xf32> to vector<2x8x128xf32>
    "tpu.trace_start"() <{level = 10 : i32, message = "bld,btd->blt"}> : () -> ()
    %cst_7 = arith.constant dense<0.000000e+00> : vector<2x8x8xf32>
    %6 = tpu.matmul %5, %1, %cst_7 {dimension_numbers = #tpu.dot_dimension_numbers<[2], [2], [1], [1], [0, 0, 0, 1, 1, 1], [0], [0]>} : vector<2x8x128xf32>, vector<2x8x128xf32>, vector<2x8x8xf32> -> vector<2x8x8xf32>
    %cst_8 = arith.constant 1.280000e+02 : f32
    "tpu.trace_stop"() : () -> ()
    %7 = math.sqrt %cst_8 : f32
    %cst_9 = arith.constant 1.000000e+00 : f32
    %8 = arith.divf %cst_9, %7 : f32
    %9 = vector.broadcast %8 : f32 to vector<2x8x8xf32>
    %10 = arith.mulf %6, %9 : vector<2x8x8xf32>
    %c0_10 = arith.constant 0 : index
    %c0_11 = arith.constant 0 : index
    %11 = vector.load %arg1[%c0_10, %c0_11] : memref<2x1xi32, #tpu.memory_space<vmem>>, vector<2x1xi32>
    %12 = tpu.iota {dimensions = array<i32: 2>} : vector<2x8x8xi32>
    %13 = vector.shape_cast %11 : vector<2x1xi32> to vector<2x1x1xi32>
    %14 = vector.broadcast %13 : vector<2x1x1xi32> to vector<2x8x8xi32>
    %15 = arith.cmpi slt, %12, %14 : vector<2x8x8xi32>
    %cst_12 = arith.constant -1.000000e+30 : f32
    %16 = vector.broadcast %cst_12 : f32 to vector<2x8x8xf32>
    %17 = arith.select %15, %10, %16 : vector<2x8x8xi1>, vector<2x8x8xf32>
    %cst_13 = arith.constant dense<0xFF800000> : vector<2x8xf32>
    %18 = vector.multi_reduction <maximumf>, %17, %cst_13 [2] : vector<2x8x8xf32> to vector<2x8xf32>
    %19 = vector.shape_cast %18 : vector<2x8xf32> to vector<2x8x1xf32>
    %20 = vector.broadcast %19 : vector<2x8x1xf32> to vector<2x8x8xf32>
    %21 = arith.subf %17, %20 : vector<2x8x8xf32>
    %22 = math.exp %21 : vector<2x8x8xf32>
    %cst_14 = arith.constant dense<0.000000e+00> : vector<2x8xf32>
    %23 = vector.multi_reduction <add>, %22, %cst_14 [2] : vector<2x8x8xf32> to vector<2x8xf32>
    %24 = vector.shape_cast %23 : vector<2x8xf32> to vector<2x8x1xf32>
    %25 = tpu.reciprocal %24 : vector<2x8x1xf32> -> vector<2x8x1xf32>
    %26 = vector.broadcast %25 : vector<2x8x1xf32> to vector<2x8x8xf32>
    %27 = arith.mulf %22, %26 : vector<2x8x8xf32>
    "tpu.trace_start"() <{level = 10 : i32, message = "blt,btd->bld"}> : () -> ()
    %cst_15 = arith.constant dense<0.000000e+00> : vector<2x8x128xf32>
    %28 = tpu.matmul %27, %1, %cst_15 {dimension_numbers = #tpu.dot_dimension_numbers<[2], [1], [1], [2], [0, 0, 0, 1, 1, 2], [0], [0]>} : vector<2x8x8xf32>, vector<2x8x128xf32>, vector<2x8x128xf32> -> vector<2x8x128xf32>
    "tpu.trace_stop"() : () -> ()
    %c0_16 = arith.constant 0 : index
    %c0_17 = arith.constant 0 : index
    %29 = vector.load %arg5[%c0_16, %c0_17] : memref<128x128xf32, #tpu.memory_space<vmem>>, vector<128x128xf32>
    %cst_18 = arith.constant dense<0.000000e+00> : vector<16x128xf32>
    %30 = tpu.matmul %4, %29, %cst_18 {dimension_numbers = #tpu.dot_dimension_numbers<[1], [0], [0], [1], [0, 0, 1, 1], [], []>} : vector<16x128xf32>, vector<128x128xf32>, vector<16x128xf32> -> vector<16x128xf32>
    %31 = vector.shape_cast %28 : vector<2x8x128xf32> to vector<16x128xf32>
    %c0_19 = arith.constant 0 : index
    %c0_20 = arith.constant 0 : index
    %32 = vector.load %arg6[%c0_19, %c0_20] : memref<128x128xf32, #tpu.memory_space<vmem>>, vector<128x128xf32>
    %cst_21 = arith.constant dense<0.000000e+00> : vector<16x128xf32>
    %33 = tpu.matmul %31, %32, %cst_21 {dimension_numbers = #tpu.dot_dimension_numbers<[1], [0], [0], [1], [0, 0, 1, 1], [], []>} : vector<16x128xf32>, vector<128x128xf32>, vector<16x128xf32> -> vector<16x128xf32>
    %34 = arith.addf %30, %33 : vector<16x128xf32>
    %c0_22 = arith.constant 0 : index
    %c0_23 = arith.constant 0 : index
    %35 = vector.load %arg7[%c0_22, %c0_23] : memref<1x128xf32, #tpu.memory_space<vmem>>, vector<1x128xf32>
    %36 = vector.broadcast %35 : vector<1x128xf32> to vector<16x128xf32>
    %37 = arith.addf %34, %36 : vector<16x128xf32>
    %cst_24 = arith.constant dense<0xFF800000> : vector<16xf32>
    %38 = vector.multi_reduction <maximumf>, %37, %cst_24 [1] : vector<16x128xf32> to vector<16xf32>
    %39 = vector.shape_cast %38 : vector<16xf32> to vector<16x1xf32>
    %40 = vector.broadcast %39 : vector<16x1xf32> to vector<16x128xf32>
    %41 = arith.subf %37, %40 : vector<16x128xf32>
    %42 = math.exp %41 : vector<16x128xf32>
    %cst_25 = arith.constant dense<0.000000e+00> : vector<16xf32>
    %43 = vector.multi_reduction <add>, %42, %cst_25 [1] : vector<16x128xf32> to vector<16xf32>
    %44 = vector.shape_cast %43 : vector<16xf32> to vector<16x1xf32>
    %45 = math.log %44 : vector<16x1xf32>
    %46 = vector.broadcast %45 : vector<16x1xf32> to vector<16x128xf32>
    %47 = arith.subf %41, %46 : vector<16x128xf32>
    %48 = vector.shape_cast %47 : vector<16x128xf32> to vector<2x8x128xf32>
    %c0_26 = arith.constant 0 : index
    %c0_27 = arith.constant 0 : index
    %c0_28 = arith.constant 0 : index
    %49 = vector.load %arg8[%c0_26, %c0_27, %c0_28] : memref<2x8x128xf32, #tpu.memory_space<vmem>>, vector<2x8x128xf32>
    tpu.vector_store %arg8[%c0_26, %c0_27, %c0_28], %48 {strides = array<i32>} : memref<2x8x128xf32, #tpu.memory_space<vmem>>, vector<2x8x128xf32>,
    return
  }
  func.func @transform_0(%arg0: i32) -> (i32, i32) {
    %c0_i32 = arith.constant 0 : i32
    %c0_i32_0 = arith.constant 0 : i32
    return %arg0, %c0_i32 : i32, i32
  }
  func.func @transform_1(%arg0: i32) -> (i32, i32, i32) {
    %c0_i32 = arith.constant 0 : i32
    %c0_i32_0 = arith.constant 0 : i32
    %c0_i32_1 = arith.constant 0 : i32
    return %arg0, %c0_i32, %c0_i32_0 : i32, i32, i32
  }
  func.func @transform_2(%arg0: i32) -> (i32, i32, i32) {
    %c0_i32 = arith.constant 0 : i32
    %c0_i32_0 = arith.constant 0 : i32
    %c0_i32_1 = arith.constant 0 : i32
    return %arg0, %c0_i32, %c0_i32_0 : i32, i32, i32
  }
  func.func @transform_3(%arg0: i32) -> (i32, i32) {
    %c0_i32 = arith.constant 0 : i32
    %c0_i32_0 = arith.constant 0 : i32
    %c0_i32_1 = arith.constant 0 : i32
    return %c0_i32, %c0_i32_0 : i32, i32
  }
  func.func @transform_4(%arg0: i32) -> (i32, i32) {
    %c0_i32 = arith.constant 0 : i32
    %c0_i32_0 = arith.constant 0 : i32
    %c0_i32_1 = arith.constant 0 : i32
    return %c0_i32, %c0_i32_0 : i32, i32
  }
  func.func @transform_5(%arg0: i32) -> (i32, i32) {
    %c0_i32 = arith.constant 0 : i32
    %c0_i32_0 = arith.constant 0 : i32
    %c0_i32_1 = arith.constant 0 : i32
    return %c0_i32, %c0_i32_0 : i32, i32
  }
  func.func @transform_6(%arg0: i32) -> (i32, i32) {
    %c0_i32 = arith.constant 0 : i32
    %c0_i32_0 = arith.constant 0 : i32
    %c0_i32_1 = arith.constant 0 : i32
    return %c0_i32, %c0_i32_0 : i32, i32
  }
  func.func @transform_7(%arg0: i32) -> (i32, i32, i32) {
    %c0_i32 = arith.constant 0 : i32
    %c0_i32_0 = arith.constant 0 : i32
    %c0_i32_1 = arith.constant 0 : i32
    return %arg0, %c0_i32, %c0_i32_0 : i32, i32, i32
  }
}

</mosaic_0001>

<llo_original>
// kernel: asr_forward.3
$region0: #{asr_forward.3}
  #allocation0 [shape = 'u32[]', space=smem, size = 0x4, offset = 0x4, fixed_abs, tag = 'smem constant byte address 0x4 - core index']
  #allocation1 [shape = 'u32[72,128]{1,0:T(1,128)}', space=vmem, size = 0x9000, scoped, tag = 'internal scratch']
  %s0 = inlined_call_operand.vmem [shape: s32[2,1], index: 0, kind: input, shape index: {}]
  %s1 = inlined_call_operand.vmem [shape: f32[2,8,128], index: 1, kind: input, shape index: {}]
  %s2 = inlined_call_operand.vmem [shape: f32[2,8,128], index: 2, kind: input, shape index: {}]
  %s3 = inlined_call_operand.vmem [shape: f32[128,128], index: 3, kind: input, shape index: {}]
  %s4 = inlined_call_operand.vmem [shape: f32[128,128], index: 4, kind: input, shape index: {}]
  %s5 = inlined_call_operand.vmem [shape: f32[128,128], index: 5, kind: input, shape index: {}]
  %s6 = inlined_call_operand.vmem [shape: f32[1,128], index: 6, kind: input, shape index: {}]
  %s7 = inlined_call_operand.hbm [shape: f32[2,8,128], index: 7, kind: output, shape index: {}]
  %s8 = sld [smem:[#allocation0]]
  $region38: #{asr_forward.3} parent=0
    _
  %s10 = ssub.s32 1, %s8
  %s11 = scalar_select 0, %s10, %s8
  $region1: #{asr_forward.3} parent=0
    #allocation2 [shape = 'u8[8192]{0}', space=vmem, size = 0x2000, scoped, tag = 'output window, operand 0, single buffered']
    #allocation3 [shape = 's32[1]{0}', space=sflag, size = 0x4, scoped, tag = 'scoped memory for asr_forward.3']
    %12 = vsyncpa [#allocation3], 0
    // Predicated region
    $region2: #{asr_forward.3} parent=1 // pred_check
      _
    $region3: #{asr_forward.3} parent=1 // pred_check_branch
      %14 = sbr.rel (0) target = $region5
    $region4: #{asr_forward.3} parent=1 // pred_region
      _
    $region5: #{asr_forward.3} parent=1 // pred_fallthru
      _
    // Predicated region
    $region6: #{asr_forward.3} parent=1 // pred_check
      _
    $region7: #{asr_forward.3} parent=1 // pred_check_branch
      %16 = sbr.rel (0) target = $region9
    $region8: #{asr_forward.3} parent=1 // pred_region
      _
    $region9: #{asr_forward.3} parent=1 // pred_fallthru
      _
    // Predicated region
    $region10: #{asr_forward.3} parent=1 // pred_check
      _
    $region11: #{asr_forward.3} parent=1 // pred_check_branch
      %18 = sbr.rel (0) target = $region13
    $region12: #{asr_forward.3} parent=1 // pred_region
      _
    $region13: #{asr_forward.3} parent=1 // pred_fallthru
      _
    // Predicated region
    $region14: #{asr_forward.3} parent=1 // pred_check
      _
    $region15: #{asr_forward.3} parent=1 // pred_check_branch
      %20 = sbr.rel (0) target = $region17
    $region16: #{asr_forward.3} parent=1 // pred_region
      _
    $region17: #{asr_forward.3} parent=1 // pred_fallthru
      _
    // Predicated region
    $region18: #{asr_forward.3} parent=1 // pred_check
      _
    $region19: #{asr_forward.3} parent=1 // pred_check_branch
      %22 = sbr.rel (0) target = $region21
    $region20: #{asr_forward.3} parent=1 // pred_region
      _
    $region21: #{asr_forward.3} parent=1 // pred_fallthru
      _
    // Predicated region
    $region22: #{asr_forward.3} parent=1 // pred_check
      _
    $region23: #{asr_forward.3} parent=1 // pred_check_branch
      %24 = sbr.rel (0) target = $region25
    $region24: #{asr_forward.3} parent=1 // pred_region
      _
    $region25: #{asr_forward.3} parent=1 // pred_fallthru
      _
    // Predicated region
    $region26: #{asr_forward.3} parent=1 // pred_check
      _
    $region27: #{asr_forward.3} parent=1 // pred_check_branch
      %26 = sbr.rel (0) target = $region29
    $region28: #{asr_forward.3} parent=1 // pred_region
      _
    $region29: #{asr_forward.3} parent=1 // pred_fallthru
      _
    %v27 = vld [vmem:[%s1] sm:$0xff]
    %v28 = vld [vmem:[%s1 + $0x8] sm:$0xff]
    %v29 = vld [vmem:[%s2] sm:$0xff]
    %v30 = vld [vmem:[%s2 + $0x8] sm:$0xff]
    %v31 = vld [vmem:[%s3] sm:$0xff]
    %v32 = vld [vmem:[%s3 + $0x8] sm:$0xff]
    %v33 = vld [vmem:[%s3 + $0x10] sm:$0xff]
    %v34 = vld [vmem:[%s3 + $0x18] sm:$0xff]
    %v35 = vld [vmem:[%s3 + $0x20] sm:$0xff]
    %v36 = vld [vmem:[%s3 + $0x28] sm:$0xff]
    %v37 = vld [vmem:[%s3 + $0x30] sm:$0xff]
    %v38 = vld [vmem:[%s3 + $0x38] sm:$0xff]
    %v39 = vld [vmem:[%s3 + $0x40] sm:$0xff]
    %v40 = vld [vmem:[%s3 + $0x48] sm:$0xff]
    %v41 = vld [vmem:[%s3 + $0x50] sm:$0xff]
    %v42 = vld [vmem:[%s3 + $0x58] sm:$0xff]
    %v43 = vld [vmem:[%s3 + $0x60] sm:$0xff]
    %v44 = vld [vmem:[%s3 + $0x68] sm:$0xff]
    %v45 = vld [vmem:[%s3 + $0x70] sm:$0xff]
    %v46 = vld [vmem:[%s3 + $0x78] sm:$0xff]
    %47 = vmatpush.msra.mxu0 %v46
    %48 = vmatpush.msra.mxu0 %v45
    %49 = vmatpush.msra.mxu0 %v44
    %50 = vmatpush.msra.mxu0 %v43
    %51 = vmatpush.msra.mxu0 %v42
    %52 = vmatpush.msra.mxu0 %v41
    %53 = vmatpush.msra.mxu0 %v40
    %54 = vmatpush.msra.mxu0 %v39
    %55 = vmatpush.msra.mxu0 %v38
    %56 = vmatpush.msra.mxu0 %v37
    %57 = vmatpush.msra.mxu0 %v36
    %58 = vmatpush.msra.mxu0 %v35
    %59 = vmatpush.msra.mxu0 %v34
    %60 = vmatpush.msra.mxu0 %v33
    %61 = vmatpush.msra.mxu0 %v32
    %62 = vmatpush.msra.mxu0 %v31
    %63 = vmatmul.f32.gmra.mxu0 %v27
    %v64 = vpop.f32.mrf.mxu0
    %v65 = vadd.f32 0.0, %v64
    %66 = vmatmul.f32.gmra.mxu0 %v28
    %v67 = vpop.f32.mrf.mxu0
    %v68 = vadd.f32 0.0, %v67
    %69 = vdwg.mxu0
    %70 = vmatpush.xpose.msra.mxu0 0.0
    %71 = vmatpush.xpose.msra.mxu0 0.0
    %72 = vmatpush.xpose.msra.mxu0 0.0
    %73 = vmatpush.xpose.msra.mxu0 0.0
    %74 = vmatpush.xpose.msra.mxu0 0.0
    %75 = vmatpush.xpose.msra.mxu0 0.0
    %76 = vmatpush.xpose.msra.mxu0 0.0
    %77 = vmatpush.xpose.msra.mxu0 0.0
    %78 = vmatpush.xpose.msra.mxu0 0.0
    %79 = vmatpush.xpose.msra.mxu0 0.0
    %80 = vmatpush.xpose.msra.mxu0 0.0
    %81 = vmatpush.xpose.msra.mxu0 0.0
    %82 = vmatpush.xpose.msra.mxu0 0.0
    %83 = vmatpush.xpose.msra.mxu0 0.0
    %84 = vmatpush.xpose.msra.mxu0 0.0
    %85 = vmatpush.xpose.msra.mxu0 %v29
    %86 = vmatmul.f32.gmra.mxu0 %v65
    %v87 = vpop.f32.mrf.mxu0
    %v88 = vadd.f32 0.0, %v87
    %89 = vdwg.mxu0
    %90 = vmatpush.xpose.msra.mxu0 0.0
    %91 = vmatpush.xpose.msra.mxu0 0.0
    %92 = vmatpush.xpose.msra.mxu0 0.0
    %93 = vmatpush.xpose.msra.mxu0 0.0
    %94 = vmatpush.xpose.msra.mxu0 0.0
    %95 = vmatpush.xpose.msra.mxu0 0.0
    %96 = vmatpush.xpose.msra.mxu0 0.0
    %97 = vmatpush.xpose.msra.mxu0 0.0
    %98 = vmatpush.xpose.msra.mxu0 0.0
    %99 = vmatpush.xpose.msra.mxu0 0.0
    %100 = vmatpush.xpose.msra.mxu0 0.0
    %101 = vmatpush.xpose.msra.mxu0 0.0
    %102 = vmatpush.xpose.msra.mxu0 0.0
    %103 = vmatpush.xpose.msra.mxu0 0.0
    %104 = vmatpush.xpose.msra.mxu0 0.0
    %105 = vmatpush.xpose.msra.mxu0 %v30
    %106 = vmatmul.f32.gmra.mxu0 %v68
    %v107 = vpop.f32.mrf.mxu0
    %v108 = vadd.f32 0.0, %v107
    %109 = vdwg.mxu0
    %v110 = vmul.f32 %v88, 0.088388346
    %v111 = vmul.f32 %v108, 0.088388346
    %v112 = vld [vmem:[%s0] sm:$0x3]
    %v113 = vlaneseq
    %v114 = vand.u32 %v113, 127
    %v115 = vrot.slane %v112, 1
    %v116 = vperm.slane %v112, 0
    %v117 = vperm.slane %v115, 0
    %118 = vset.pattern.permute.xlu0 0
    %119 = vperm.xlu0 %118, %v116
    %v120 = vpop.permute.xlu0 %119
    %121 = vset.pattern.permute.xlu0 0
    %122 = vperm.xlu0 %121, %v117
    %v123 = vpop.permute.xlu0 %122
    %vm124 = vcmp.lt.s32.totalorder %v114, %v120
    %vm125 = vcmp.lt.s32.totalorder %v114, %v123
    %v126 = vsel %vm124, %v110, -1e+30
    %v127 = vsel %vm125, %v111, -1e+30
    %vm128 = vcmask 64512
    %v129 = vsel %vm128, %v126, -inf
    %130 = vmax.xlane.f32.xlu0 %v129
    %v131 = vpop.xlane.xlu0 %130
    %v132 = vsel %vm128, %v127, -inf
    %133 = vmax.xlane.f32.xlu0 %v132
    %v134 = vpop.xlane.xlu0 %133
    %v135 = vsub.f32 %v126, %v131
    %v136 = vsub.f32 %v127, %v134
    %v137 = vmul.f32 %v135, 1.442695
    %v138 = vpow.pop %v137
    %v139 = vmul.f32 %v136, 1.442695
    %v140 = vpow.pop %v139
    %v141 = vsel %vm128, %v138, 0.0
    %142 = vadd.xlane.f32.xlu0 %v141
    %v143 = vpop.xlane.xlu0 %142
    %v144 = vsel %vm128, %v140, 0.0
    %145 = vadd.xlane.f32.xlu0 %v144
    %v146 = vpop.xlane.xlu0 %145
    %v147 = vrcp.pop %v143
    %v148 = vmul.f32 %v143, %v147
    %v149 = vsub.f32 1.0, %v148
    %v150 = vmul.f32 %v147, %v149
    %v151 = vadd.f32 %v147, %v150
    %vm152 = vweird.f32 %v143
    %vm153 = vweird.f32 %v147
    %vm154 = vmor %vm152, %vm153
    %v155 = vsel %vm154, %v147, %v151
    %v156 = vand.u32 2147483647, %v143
    %vm157 = vcmp.eq.f32.partialorder %v156, 8.507059e+37
    %v158 = vand.u32 %v143, 2147483648
    %v159 = vor.u32 1.1754944e-38, %v158
    %v160 = vsel %vm157, %v159, %v155
    %v161 = vrcp.pop %v146
    %v162 = vmul.f32 %v146, %v161
    %v163 = vsub.f32 1.0, %v162
    %v164 = vmul.f32 %v161, %v163
    %v165 = vadd.f32 %v161, %v164
    %vm166 = vweird.f32 %v146
    %vm167 = vweird.f32 %v161
    %vm168 = vmor %vm166, %vm167
    %v169 = vsel %vm168, %v161, %v165
    %v170 = vand.u32 2147483647, %v146
    %vm171 = vcmp.eq.f32.partialorder %v170, 8.507059e+37
    %v172 = vand.u32 %v146, 2147483648
    %v173 = vor.u32 1.1754944e-38, %v172
    %v174 = vsel %vm171, %v173, %v169
    %v175 = vmul.f32 %v138, %v160
    %v176 = vmul.f32 %v140, %v174
    %v178 = vsel %vm128, %v175, 0
    %180 = vmatpush.msra.mxu0 0.0
    %181 = vmatpush.msra.mxu0 0.0
    %182 = vmatpush.msra.mxu0 0.0
    %183 = vmatpush.msra.mxu0 0.0
    %184 = vmatpush.msra.mxu0 0.0
    %185 = vmatpush.msra.mxu0 0.0
    %186 = vmatpush.msra.mxu0 0.0
    %187 = vmatpush.msra.mxu0 0.0
    %188 = vmatpush.msra.mxu0 0.0
    %189 = vmatpush.msra.mxu0 0.0
    %190 = vmatpush.msra.mxu0 0.0
    %191 = vmatpush.msra.mxu0 0.0
    %192 = vmatpush.msra.mxu0 0.0
    %193 = vmatpush.msra.mxu0 0.0
    %194 = vmatpush.msra.mxu0 0.0
    %195 = vmatpush.msra.mxu0 %v29
    %196 = vmatmul.f32.gmra.mxu0 %v178
    %v197 = vpop.f32.mrf.mxu0
    %v198 = vadd.f32 0.0, %v197
    %199 = vdwg.mxu0
    %v201 = vsel %vm128, %v176, 0
    %203 = vmatpush.msra.mxu0 0.0
    %204 = vmatpush.msra.mxu0 0.0
    %205 = vmatpush.msra.mxu0 0.0
    %206 = vmatpush.msra.mxu0 0.0
    %207 = vmatpush.msra.mxu0 0.0
    %208 = vmatpush.msra.mxu0 0.0
    %209 = vmatpush.msra.mxu0 0.0
    %210 = vmatpush.msra.mxu0 0.0
    %211 = vmatpush.msra.mxu0 0.0
    %212 = vmatpush.msra.mxu0 0.0
    %213 = vmatpush.msra.mxu0 0.0
    %214 = vmatpush.msra.mxu0 0.0
    %215 = vmatpush.msra.mxu0 0.0
    %216 = vmatpush.msra.mxu0 0.0
    %217 = vmatpush.msra.mxu0 0.0
    %218 = vmatpush.msra.mxu0 %v30
    %219 = vmatmul.f32.gmra.mxu0 %v201
    %v220 = vpop.f32.mrf.mxu0
    %v221 = vadd.f32 0.0, %v220
    %222 = vdwg.mxu0
    %v223 = vld [vmem:[%s4] sm:$0xff]
    %v224 = vld [vmem:[%s4 + $0x8] sm:$0xff]
    %v225 = vld [vmem:[%s4 + $0x10] sm:$0xff]
    %v226 = vld [vmem:[%s4 + $0x18] sm:$0xff]
    %v227 = vld [vmem:[%s4 + $0x20] sm:$0xff]
    %v228 = vld [vmem:[%s4 + $0x28] sm:$0xff]
    %v229 = vld [vmem:[%s4 + $0x30] sm:$0xff]
    %v230 = vld [vmem:[%s4 + $0x38] sm:$0xff]
    %v231 = vld [vmem:[%s4 + $0x40] sm:$0xff]
    %v232 = vld [vmem:[%s4 + $0x48] sm:$0xff]
    %v233 = vld [vmem:[%s4 + $0x50] sm:$0xff]
    %v234 = vld [vmem:[%s4 + $0x58] sm:$0xff]
    %v235 = vld [vmem:[%s4 + $0x60] sm:$0xff]
    %v236 = vld [vmem:[%s4 + $0x68] sm:$0xff]
    %v237 = vld [vmem:[%s4 + $0x70] sm:$0xff]
    %v238 = vld [vmem:[%s4 + $0x78] sm:$0xff]
    %v239 = vld [vmem:[%s5] sm:$0xff]
    %v240 = vld [vmem:[%s5 + $0x8] sm:$0xff]
    %v241 = vld [vmem:[%s5 + $0x10] sm:$0xff]
    %v242 = vld [vmem:[%s5 + $0x18] sm:$0xff]
    %v243 = vld [vmem:[%s5 + $0x20] sm:$0xff]
    %v244 = vld [vmem:[%s5 + $0x28] sm:$0xff]
    %v245 = vld [vmem:[%s5 + $0x30] sm:$0xff]
    %v246 = vld [vmem:[%s5 + $0x38] sm:$0xff]
    %v247 = vld [vmem:[%s5 + $0x40] sm:$0xff]
    %v248 = vld [vmem:[%s5 + $0x48] sm:$0xff]
    %v249 = vld [vmem:[%s5 + $0x50] sm:$0xff]
    %v250 = vld [vmem:[%s5 + $0x58] sm:$0xff]
    %v251 = vld [vmem:[%s5 + $0x60] sm:$0xff]
    %v252 = vld [vmem:[%s5 + $0x68] sm:$0xff]
    %v253 = vld [vmem:[%s5 + $0x70] sm:$0xff]
    %v254 = vld [vmem:[%s5 + $0x78] sm:$0xff]
    %255 = vmatpush.msra.mxu0 %v254
    %256 = vmatpush.msra.mxu0 %v253
    %257 = vmatpush.msra.mxu0 %v252
    %258 = vmatpush.msra.mxu0 %v251
    %259 = vmatpush.msra.mxu0 %v250
    %260 = vmatpush.msra.mxu0 %v249
    %261 = vmatpush.msra.mxu0 %v248
    %262 = vmatpush.msra.mxu0 %v247
    %263 = vmatpush.msra.mxu0 %v246
    %264 = vmatpush.msra.mxu0 %v245
    %265 = vmatpush.msra.mxu0 %v244
    %266 = vmatpush.msra.mxu0 %v243
    %267 = vmatpush.msra.mxu0 %v242
    %268 = vmatpush.msra.mxu0 %v241
    %269 = vmatpush.msra.mxu0 %v240
    %270 = vmatpush.msra.mxu0 %v239
    %271 = vmatmul.f32.gmra.mxu0 %v198
    %v272 = vpop.f32.mrf.mxu0
    %v273 = vadd.f32 0.0, %v272
    %274 = vmatmul.f32.gmra.mxu0 %v221
    %v275 = vpop.f32.mrf.mxu0
    %v276 = vadd.f32 0.0, %v275
    %277 = vdwg.mxu0
    %278 = vmatpush.msra.mxu0 %v238
    %279 = vmatpush.msra.mxu0 %v237
    %280 = vmatpush.msra.mxu0 %v236
    %281 = vmatpush.msra.mxu0 %v235
    %282 = vmatpush.msra.mxu0 %v234
    %283 = vmatpush.msra.mxu0 %v233
    %284 = vmatpush.msra.mxu0 %v232
    %285 = vmatpush.msra.mxu0 %v231
    %286 = vmatpush.msra.mxu0 %v230
    %287 = vmatpush.msra.mxu0 %v229
    %288 = vmatpush.msra.mxu0 %v228
    %289 = vmatpush.msra.mxu0 %v227
    %290 = vmatpush.msra.mxu0 %v226
    %291 = vmatpush.msra.mxu0 %v225
    %292 = vmatpush.msra.mxu0 %v224
    %293 = vmatpush.msra.mxu0 %v223
    %294 = vmatmul.f32.gmra.mxu0 %v65
    %v295 = vpop.f32.mrf.mxu0
    %v296 = vadd.f32 %v273, %v295
    %297 = vmatmul.f32.gmra.mxu0 %v68
    %v298 = vpop.f32.mrf.mxu0
    %v299 = vadd.f32 %v276, %v298
    %300 = vdwg.mxu0
    %v301 = vld [vmem:[%s6] sm:$0x1]
    %v303 = vperm.slane %v301, 0
    %v305 = vadd.f32 %v296, %v303
    %v306 = vadd.f32 %v299, %v303
    %307 = vmax.xlane.f32.xlu0 %v305
    %v308 = vpop.xlane.xlu0 %307
    %309 = vmax.xlane.f32.xlu0 %v306
    %v310 = vpop.xlane.xlu0 %309
    %v311 = vsub.f32 %v305, %v308
    %v312 = vsub.f32 %v306, %v310
    %v313 = vmul.f32 %v311, 1.442695
    %v314 = vpow.pop %v313
    %v315 = vmul.f32 %v312, 1.442695
    %v316 = vpow.pop %v315
    %317 = vadd.xlane.f32.xlu0 %v314
    %v318 = vpop.xlane.xlu0 %317
    %319 = vadd.xlane.f32.xlu0 %v316
    %v320 = vpop.xlane.xlu0 %319
    %v321 = vlog2.pop %v318
    %v322 = vmul.f32 %v321, 0.6931472
    %v323 = vlog2.pop %v320
    %v324 = vmul.f32 %v323, 0.6931472
    %v325 = vsub.f32 %v311, %v322
    %v326 = vsub.f32 %v312, %v324
    %327 = vst [vmem:[#allocation2] sm:$0xff] %v325
    %328 = vst [vmem:[#allocation2 + $0x8] sm:$0xff] %v326
    // Predicated region
    $region30: #{asr_forward.3} parent=1 // pred_check
      _
    $region31: #{asr_forward.3} parent=1 // pred_check_branch
      %330 = sbr.rel (0) target = $region33
    $region32: #{asr_forward.3} parent=1 // pred_region
      %332 = vsyncadd [#allocation3], 0
      %s333 = sshll.u32 [#allocation2], 4
      %s334 = int_to_ptr.vmem [resolvable:$true] %s333
      %s335 = sshll.u32 %s7, 4
      %s336 = int_to_ptr.hbm [resolvable:$true] %s335
      %341 = dma.vmem_to_hbm [thread:$0]  %s334, 256, %s336, [#allocation3], 128, 128, 8
    $region33: #{asr_forward.3} parent=1 // pred_fallthru
      _
    // Predicated region
    $region34: #{asr_forward.3} parent=1 // pred_check
      _
    $region35: #{asr_forward.3} parent=1 // pred_check_branch
      %343 = sbr.rel (0) target = $region37
    $region36: #{asr_forward.3} parent=1 // pred_region
      %345 = dma.done [#allocation3], 256
    $region37: #{asr_forward.3} parent=1 // pred_fallthru
      _
    %346 = vsyncpa [#allocation3], 1

// kernel: asr_forward.2
$region0: #{asr_forward.2}
  #allocation0 [shape = 'u32[]', space=smem, size = 0x4, offset = 0x4, fixed_abs, tag = 'smem constant byte address 0x4 - core index']
  #allocation1 [shape = 'u32[72,128]{1,0:T(1,128)}', space=vmem, size = 0x9000, scoped, tag = 'internal scratch']
  %s0 = inlined_call_operand.vmem [shape: bf16[256,256], index: 0, kind: input, shape index: {}]
  %s1 = inlined_call_operand.vmem [shape: bf16[256,256], index: 1, kind: input, shape index: {}]
  %s2 = inlined_call_operand.vmem [shape: f32[1,256], index: 2, kind: input, shape index: {}]
  %s3 = inlined_call_operand.vmem [shape: bf16[256,256], index: 3, kind: input, shape index: {}]
  %s4 = inlined_call_operand.vmem [shape: f32[1,256], index: 4, kind: input, shape index: {}]
  %s5 = inlined_call_operand.vmem [shape: bf16[256,128], index: 5, kind: input, shape index: {}]
  %s6 = inlined_call_operand.vmem [shape: f32[1,128], index: 6, kind: input, shape index: {}]
  %s7 = inlined_call_operand.vmem [shape: bf16[128,128], index: 7, kind: input, shape index: {}]
  %s8 = inlined_call_operand.vmem [shape: f32[256,128], index: 8, kind: output, shape index: {0}]
  %s9 = inlined_call_operand.vmem [shape: f32[256,128], index: 9, kind: output, shape index: {1}]
  %10 = xla_tuple %s8, %s9
  %s11 = sld [smem:[#allocation0]]
  $region50: #{asr_forward.2} parent=0
    _
  %s13 = ssub.s32 1, %s11
  %s14 = scalar_select 0, %s13, %s11
  // Predicated region
  $region2: #{asr_forward.2} parent=0 // pred_check
    _
  $region3: #{asr_forward.2} parent=0 // pred_check_branch
    %16 = sbr.rel (0) target = $region5
  $region4: #{asr_forward.2} parent=0 // pred_region
    _
  $region5: #{asr_forward.2} parent=0 // pred_fallthru
    _
  // Predicated region
  $region6: #{asr_forward.2} parent=0 // pred_check
    _
  $region7: #{asr_forward.2} parent=0 // pred_check_branch
    %18 = sbr.rel (0) target = $region9
  $region8: #{asr_forward.2} parent=0 // pred_region
    _
  $region9: #{asr_forward.2} parent=0 // pred_fallthru
    _
  // Predicated region
  $region10: #{asr_forward.2} parent=0 // pred_check
    _
  $region11: #{asr_forward.2} parent=0 // pred_check_branch
    %20 = sbr.rel (0) target = $region13
  $region12: #{asr_forward.2} parent=0 // pred_region
    _
  $region13: #{asr_forward.2} parent=0 // pred_fallthru
    _
  // Predicated region
  $region14: #{asr_forward.2} parent=0 // pred_check
    _
  $region15: #{asr_forward.2} parent=0 // pred_check_branch
    %22 = sbr.rel (0) target = $region17
  $region16: #{asr_forward.2} parent=0 // pred_region
    _
  $region17: #{asr_forward.2} parent=0 // pred_fallthru
    _
  // Predicated region
  $region18: #{asr_forward.2} parent=0 // pred_check
    _
  $region19: #{asr_forward.2} parent=0 // pred_check_branch
    %24 = sbr.rel (0) target = $region21
  $region20: #{asr_forward.2} parent=0 // pred_region
    _
  $region21: #{asr_forward.2} parent=0 // pred_fallthru
    _
  // Predicated region
  $region22: #{asr_forward.2} parent=0 // pred_check
    _
  $region23: #{asr_forward.2} parent=0 // pred_check_branch
    %26 = sbr.rel (0) target = $region25
  $region24: #{asr_forward.2} parent=0 // pred_region
    _
  $region25: #{asr_forward.2} parent=0 // pred_fallthru
    _
  // Predicated region
  $region26: #{asr_forward.2} parent=0 // pred_check
    _
  $region27: #{asr_forward.2} parent=0 // pred_check_branch
    %28 = sbr.rel (0) target = $region29
  $region28: #{asr_forward.2} parent=0 // pred_region
    _
  $region29: #{asr_forward.2} parent=0 // pred_fallthru
    _
  // Predicated region
  $region30: #{asr_forward.2} parent=0 // pred_check
    _
  $region31: #{asr_forward.2} parent=0 // pred_check_branch
    %30 = sbr.rel (0) target = $region33
  $region32: #{asr_forward.2} parent=0 // pred_region
    _
  $region33: #{asr_forward.2} parent=0 // pred_fallthru
    _
  %v31 = vld [vmem:[%s0] sm:$0xff]
  %v32 = vld [vmem:[%s0 + $0x8] sm:$0xff]
  %v33 = vld [vmem:[%s0 + $0x10] sm:$0xff]
  %v34 = vld [vmem:[%s0 + $0x18] sm:$0xff]
  %v35 = vld [vmem:[%s0 + $0x20] sm:$0xff]
  %v36 = vld [vmem:[%s0 + $0x28] sm:$0xff]
  %v37 = vld [vmem:[%s0 + $0x30] sm:$0xff]
  %v38 = vld [vmem:[%s0 + $0x38] sm:$0xff]
  %v39 = vld [vmem:[%s0 + $0x40] sm:$0xff]
  %v40 = vld [vmem:[%s0 + $0x48] sm:$0xff]
  %v41 = vld [vmem:[%s0 + $0x50] sm:$0xff]
  %v42 = vld [vmem:[%s0 + $0x58] sm:$0xff]
  %v43 = vld [vmem:[%s0 + $0x60] sm:$0xff]
  %v44 = vld [vmem:[%s0 + $0x68] sm:$0xff]
  %v45 = vld [vmem:[%s0 + $0x70] sm:$0xff]
  %v46 = vld [vmem:[%s0 + $0x78] sm:$0xff]
  %v47 = vld [vmem:[%s0 + $0x80] sm:$0xff]
  %v48 = vld [vmem:[%s0 + $0x88] sm:$0xff]
  %v49 = vld [vmem:[%s0 + $0x90] sm:$0xff]
  %v50 = vld [vmem:[%s0 + $0x98] sm:$0xff]
  %v51 = vld [vmem:[%s0 + $0xa0] sm:$0xff]
  %v52 = vld [vmem:[%s0 + $0xa8] sm:$0xff]
  %v53 = vld [vmem:[%s0 + $0xb0] sm:$0xff]
  %v54 = vld [vmem:[%s0 + $0xb8] sm:$0xff]
  %v55 = vld [vmem:[%s0 + $0xc0] sm:$0xff]
  %v56 = vld [vmem:[%s0 + $0xc8] sm:$0xff]
  %v57 = vld [vmem:[%s0 + $0xd0] sm:$0xff]
  %v58 = vld [vmem:[%s0 + $0xd8] sm:$0xff]
  %v59 = vld [vmem:[%s0 + $0xe0] sm:$0xff]
  %v60 = vld [vmem:[%s0 + $0xe8] sm:$0xff]
  %v61 = vld [vmem:[%s0 + $0xf0] sm:$0xff]
  %v62 = vld [vmem:[%s0 + $0xf8] sm:$0xff]
  %v63 = vld [vmem:[%s1] sm:$0xff]
  %v64 = vld [vmem:[%s1 + $0x8] sm:$0xff]
  %v65 = vld [vmem:[%s1 + $0x10] sm:$0xff]
  %v66 = vld [vmem:[%s1 + $0x18] sm:$0xff]
  %v67 = vld [vmem:[%s1 + $0x20] sm:$0xff]
  %v68 = vld [vmem:[%s1 + $0x28] sm:$0xff]
  %v69 = vld [vmem:[%s1 + $0x30] sm:$0xff]
  %v70 = vld [vmem:[%s1 + $0x38] sm:$0xff]
  %v71 = vld [vmem:[%s1 + $0x40] sm:$0xff]
  %v72 = vld [vmem:[%s1 + $0x48] sm:$0xff]
  %v73 = vld [vmem:[%s1 + $0x50] sm:$0xff]
  %v74 = vld [vmem:[%s1 + $0x58] sm:$0xff]
  %v75 = vld [vmem:[%s1 + $0x60] sm:$0xff]
  %v76 = vld [vmem:[%s1 + $0x68] sm:$0xff]
  %v77 = vld [vmem:[%s1 + $0x70] sm:$0xff]
  %v78 = vld [vmem:[%s1 + $0x78] sm:$0xff]
  %v79 = vld [vmem:[%s1 + $0x80] sm:$0xff]
  %v80 = vld [vmem:[%s1 + $0x88] sm:$0xff]
  %v81 = vld [vmem:[%s1 + $0x90] sm:$0xff]
  %v82 = vld [vmem:[%s1 + $0x98] sm:$0xff]
  %v83 = vld [vmem:[%s1 + $0xa0] sm:$0xff]
  %v84 = vld [vmem:[%s1 + $0xa8] sm:$0xff]
  %v85 = vld [vmem:[%s1 + $0xb0] sm:$0xff]
  %v86 = vld [vmem:[%s1 + $0xb8] sm:$0xff]
  %v87 = vld [vmem:[%s1 + $0xc0] sm:$0xff]
  %v88 = vld [vmem:[%s1 + $0xc8] sm:$0xff]
  %v89 = vld [vmem:[%s1 + $0xd0] sm:$0xff]
  %v90 = vld [vmem:[%s1 + $0xd8] sm:$0xff]
  %v91 = vld [vmem:[%s1 + $0xe0] sm:$0xff]
  %v92 = vld [vmem:[%s1 + $0xe8] sm:$0xff]
  %v93 = vld [vmem:[%s1 + $0xf0] sm:$0xff]
  %v94 = vld [vmem:[%s1 + $0xf8] sm:$0xff]
  %v95 = vld [vmem:[%s2] sm:$0x3]
  %v97 = vperm.slane %v95, 0
  %v98 = vperm.slane %v95, 1
  %v133 = vunpack.c.l.b16 %v31
  %v134 = vunpack.c.h.b16 %v31
  %v135 = vunpack.c.l.b16 %v32
  %v136 = vunpack.c.h.b16 %v32
  %v137 = vunpack.c.l.b16 %v33
  %v138 = vunpack.c.h.b16 %v33
  %v139 = vunpack.c.l.b16 %v34
  %v140 = vunpack.c.h.b16 %v34
  %v141 = vunpack.c.l.b16 %v35
  %v142 = vunpack.c.h.b16 %v35
  %v143 = vunpack.c.l.b16 %v36
  %v144 = vunpack.c.h.b16 %v36
  %v145 = vunpack.c.l.b16 %v37
  %v146 = vunpack.c.h.b16 %v37
  %v147 = vunpack.c.l.b16 %v38
  %v148 = vunpack.c.h.b16 %v38
  %v149 = vunpack.c.l.b16 %v39
  %v150 = vunpack.c.h.b16 %v39
  %v151 = vunpack.c.l.b16 %v40
  %v152 = vunpack.c.h.b16 %v40
  %v153 = vunpack.c.l.b16 %v41
  %v154 = vunpack.c.h.b16 %v41
  %v155 = vunpack.c.l.b16 %v42
  %v156 = vunpack.c.h.b16 %v42
  %v157 = vunpack.c.l.b16 %v43
  %v158 = vunpack.c.h.b16 %v43
  %v159 = vunpack.c.l.b16 %v44
  %v160 = vunpack.c.h.b16 %v44
  %v161 = vunpack.c.l.b16 %v45
  %v162 = vunpack.c.h.b16 %v45
  %v163 = vunpack.c.l.b16 %v46
  %v164 = vunpack.c.h.b16 %v46
  %v165 = vunpack.c.l.b16 %v47
  %v166 = vunpack.c.h.b16 %v47
  %v167 = vunpack.c.l.b16 %v48
  %v168 = vunpack.c.h.b16 %v48
  %v169 = vunpack.c.l.b16 %v49
  %v170 = vunpack.c.h.b16 %v49
  %v171 = vunpack.c.l.b16 %v50
  %v172 = vunpack.c.h.b16 %v50
  %v173 = vunpack.c.l.b16 %v51
  %v174 = vunpack.c.h.b16 %v51
  %v175 = vunpack.c.l.b16 %v52
  %v176 = vunpack.c.h.b16 %v52
  %v177 = vunpack.c.l.b16 %v53
  %v178 = vunpack.c.h.b16 %v53
  %v179 = vunpack.c.l.b16 %v54
  %v180 = vunpack.c.h.b16 %v54
  %v181 = vunpack.c.l.b16 %v55
  %v182 = vunpack.c.h.b16 %v55
  %v183 = vunpack.c.l.b16 %v56
  %v184 = vunpack.c.h.b16 %v56
  %v185 = vunpack.c.l.b16 %v57
  %v186 = vunpack.c.h.b16 %v57
  %v187 = vunpack.c.l.b16 %v58
  %v188 = vunpack.c.h.b16 %v58
  %v189 = vunpack.c.l.b16 %v59
  %v190 = vunpack.c.h.b16 %v59
  %v191 = vunpack.c.l.b16 %v60
  %v192 = vunpack.c.h.b16 %v60
  %v193 = vunpack.c.l.b16 %v61
  %v194 = vunpack.c.h.b16 %v61
  %v195 = vunpack.c.l.b16 %v62
  %v196 = vunpack.c.h.b16 %v62
  %v197 = vpack.c.b16 %v135, %v133
  %v198 = vpack.c.b16 %v136, %v134
  %v199 = vpack.c.b16 %v139, %v137
  %v200 = vpack.c.b16 %v140, %v138
  %v201 = vpack.c.b16 %v143, %v141
  %v202 = vpack.c.b16 %v144, %v142
  %v203 = vpack.c.b16 %v147, %v145
  %v204 = vpack.c.b16 %v148, %v146
  %v205 = vpack.c.b16 %v151, %v149
  %v206 = vpack.c.b16 %v152, %v150
  %v207 = vpack.c.b16 %v155, %v153
  %v208 = vpack.c.b16 %v156, %v154
  %v209 = vpack.c.b16 %v159, %v157
  %v210 = vpack.c.b16 %v160, %v158
  %v211 = vpack.c.b16 %v163, %v161
  %v212 = vpack.c.b16 %v164, %v162
  %v213 = vpack.c.b16 %v167, %v165
  %v214 = vpack.c.b16 %v168, %v166
  %v215 = vpack.c.b16 %v171, %v169
  %v216 = vpack.c.b16 %v172, %v170
  %v217 = vpack.c.b16 %v175, %v173
  %v218 = vpack.c.b16 %v176, %v174
  %v219 = vpack.c.b16 %v179, %v177
  %v220 = vpack.c.b16 %v180, %v178
  %v221 = vpack.c.b16 %v183, %v181
  %v222 = vpack.c.b16 %v184, %v182
  %v223 = vpack.c.b16 %v187, %v185
  %v224 = vpack.c.b16 %v188, %v186
  %v225 = vpack.c.b16 %v191, %v189
  %v226 = vpack.c.b16 %v192, %v190
  %v227 = vpack.c.b16 %v195, %v193
  %v228 = vpack.c.b16 %v196, %v194
  %v293 = vunpack.c.l.b16 %v63
  %v294 = vunpack.c.h.b16 %v63
  %v295 = vunpack.c.l.b16 %v64
  %v296 = vunpack.c.h.b16 %v64
  %v297 = vunpack.c.l.b16 %v65
  %v298 = vunpack.c.h.b16 %v65
  %v299 = vunpack.c.l.b16 %v66
  %v300 = vunpack.c.h.b16 %v66
  %v301 = vunpack.c.l.b16 %v67
  %v302 = vunpack.c.h.b16 %v67
  %v303 = vunpack.c.l.b16 %v68
  %v304 = vunpack.c.h.b16 %v68
  %v305 = vunpack.c.l.b16 %v69
  %v306 = vunpack.c.h.b16 %v69
  %v307 = vunpack.c.l.b16 %v70
  %v308 = vunpack.c.h.b16 %v70
  %v309 = vunpack.c.l.b16 %v71
  %v310 = vunpack.c.h.b16 %v71
  %v311 = vunpack.c.l.b16 %v72
  %v312 = vunpack.c.h.b16 %v72
  %v313 = vunpack.c.l.b16 %v73
  %v314 = vunpack.c.h.b16 %v73
  %v315 = vunpack.c.l.b16 %v74
  %v316 = vunpack.c.h.b16 %v74
  %v317 = vunpack.c.l.b16 %v75
  %v318 = vunpack.c.h.b16 %v75
  %v319 = vunpack.c.l.b16 %v76
  %v320 = vunpack.c.h.b16 %v76
  %v321 = vunpack.c.l.b16 %v77
  %v322 = vunpack.c.h.b16 %v77
  %v323 = vunpack.c.l.b16 %v78
  %v324 = vunpack.c.h.b16 %v78
  %v325 = vunpack.c.l.b16 %v79
  %v326 = vunpack.c.h.b16 %v79
  %v327 = vunpack.c.l.b16 %v80
  %v328 = vunpack.c.h.b16 %v80
  %v329 = vunpack.c.l.b16 %v81
  %v330 = vunpack.c.h.b16 %v81
  %v331 = vunpack.c.l.b16 %v82
  %v332 = vunpack.c.h.b16 %v82
  %v333 = vunpack.c.l.b16 %v83
  %v334 = vunpack.c.h.b16 %v83
  %v335 = vunpack.c.l.b16 %v84
  %v336 = vunpack.c.h.b16 %v84
  %v337 = vunpack.c.l.b16 %v85
  %v338 = vunpack.c.h.b16 %v85
  %v339 = vunpack.c.l.b16 %v86
  %v340 = vunpack.c.h.b16 %v86
  %v341 = vunpack.c.l.b16 %v87
  %v342 = vunpack.c.h.b16 %v87
  %v343 = vunpack.c.l.b16 %v88
  %v344 = vunpack.c.h.b16 %v88
  %v345 = vunpack.c.l.b16 %v89
  %v346 = vunpack.c.h.b16 %v89
  %v347 = vunpack.c.l.b16 %v90
  %v348 = vunpack.c.h.b16 %v90
  %v349 = vunpack.c.l.b16 %v91
  %v350 = vunpack.c.h.b16 %v91
  %v351 = vunpack.c.l.b16 %v92
  %v352 = vunpack.c.h.b16 %v92
  %v353 = vunpack.c.l.b16 %v93
  %v354 = vunpack.c.h.b16 %v93
  %v355 = vunpack.c.l.b16 %v94
  %v356 = vunpack.c.h.b16 %v94
  %v357 = vpack.c.b16 %v295, %v293
  %v358 = vpack.c.b16 %v296, %v294
  %v359 = vpack.c.b16 %v299, %v297
  %v360 = vpack.c.b16 %v300, %v298
  %v361 = vpack.c.b16 %v303, %v301
  %v362 = vpack.c.b16 %v304, %v302
  %v363 = vpack.c.b16 %v307, %v305
  %v364 = vpack.c.b16 %v308, %v306
  %v365 = vpack.c.b16 %v311, %v309
  %v366 = vpack.c.b16 %v312, %v310
  %v367 = vpack.c.b16 %v315, %v313
  %v368 = vpack.c.b16 %v316, %v314
  %v369 = vpack.c.b16 %v319, %v317
  %v370 = vpack.c.b16 %v320, %v318
  %v371 = vpack.c.b16 %v323, %v321
  %v372 = vpack.c.b16 %v324, %v322
  %v373 = vpack.c.b16 %v327, %v325
  %v374 = vpack.c.b16 %v328, %v326
  %v375 = vpack.c.b16 %v331, %v329
  %v376 = vpack.c.b16 %v332, %v330
  %v377 = vpack.c.b16 %v335, %v333
  %v378 = vpack.c.b16 %v336, %v334
  %v379 = vpack.c.b16 %v339, %v337
  %v380 = vpack.c.b16 %v340, %v338
  %v381 = vpack.c.b16 %v343, %v341
  %v382 = vpack.c.b16 %v344, %v342
  %v383 = vpack.c.b16 %v347, %v345
  %v384 = vpack.c.b16 %v348, %v346
  %v385 = vpack.c.b16 %v351, %v349
  %v386 = vpack.c.b16 %v352, %v350
  %v387 = vpack.c.b16 %v355, %v353
  %v388 = vpack.c.b16 %v356, %v354
  %421 = vmatpush.bf16.msra.mxu0 %v371
  %422 = vmatpush.bf16.msra.mxu0 %v369
  %423 = vmatpush.bf16.msra.mxu0 %v367
  %424 = vmatpush.bf16.msra.mxu0 %v365
  %425 = vmatpush.bf16.msra.mxu0 %v363
  %426 = vmatpush.bf16.msra.mxu0 %v361
  %427 = vmatpush.bf16.msra.mxu0 %v359
  %428 = vmatpush.bf16.msra.mxu0 %v357
  %429 = vmatmul.bf16.gmra.mxu0 %v197
  %v430 = vpop.f32.mrf.mxu0
  %v431 = vadd.f32 %v97, %v430
  %v432 = vpop.f32.mrf.mxu0
  %v433 = vadd.f32 %v97, %v432
  %434 = vmatmul.bf16.gmra.mxu0 %v199
  %v435 = vpop.f32.mrf.mxu0
  %v436 = vadd.f32 %v97, %v435
  %v437 = vpop.f32.mrf.mxu0
  %v438 = vadd.f32 %v97, %v437
  %439 = vmatmul.bf16.gmra.mxu0 %v201
  %v440 = vpop.f32.mrf.mxu0
  %v441 = vadd.f32 %v97, %v440
  %v442 = vpop.f32.mrf.mxu0
  %v443 = vadd.f32 %v97, %v442
  %444 = vmatmul.bf16.gmra.mxu0 %v203
  %v445 = vpop.f32.mrf.mxu0
  %v446 = vadd.f32 %v97, %v445
  %v447 = vpop.f32.mrf.mxu0
  %v448 = vadd.f32 %v97, %v447
  %449 = vmatmul.bf16.gmra.mxu0 %v205
  %v450 = vpop.f32.mrf.mxu0
  %v451 = vadd.f32 %v97, %v450
  %v452 = vpop.f32.mrf.mxu0
  %v453 = vadd.f32 %v97, %v452
  %454 = vmatmul.bf16.gmra.mxu0 %v207
  %v455 = vpop.f32.mrf.mxu0
  %v456 = vadd.f32 %v97, %v455
  %v457 = vpop.f32.mrf.mxu0
  %v458 = vadd.f32 %v97, %v457
  %459 = vmatmul.bf16.gmra.mxu0 %v209
  %v460 = vpop.f32.mrf.mxu0
  %v461 = vadd.f32 %v97, %v460
  %v462 = vpop.f32.mrf.mxu0
  %v463 = vadd.f32 %v97, %v462
  %464 = vmatmul.bf16.gmra.mxu0 %v211
  %v465 = vpop.f32.mrf.mxu0
  %v466 = vadd.f32 %v97, %v465
  %v467 = vpop.f32.mrf.mxu0
  %v468 = vadd.f32 %v97, %v467
  %469 = vmatmul.bf16.gmra.mxu0 %v213
  %v470 = vpop.f32.mrf.mxu0
  %v471 = vadd.f32 %v97, %v470
  %v472 = vpop.f32.mrf.mxu0
  %v473 = vadd.f32 %v97, %v472
  %474 = vmatmul.bf16.gmra.mxu0 %v215
  %v475 = vpop.f32.mrf.mxu0
  %v476 = vadd.f32 %v97, %v475
  %v477 = vpop.f32.mrf.mxu0
  %v478 = vadd.f32 %v97, %v477
  %479 = vmatmul.bf16.gmra.mxu0 %v217
  %v480 = vpop.f32.mrf.mxu0
  %v481 = vadd.f32 %v97, %v480
  %v482 = vpop.f32.mrf.mxu0
  %v483 = vadd.f32 %v97, %v482
  %484 = vmatmul.bf16.gmra.mxu0 %v219
  %v485 = vpop.f32.mrf.mxu0
  %v486 = vadd.f32 %v97, %v485
  %v487 = vpop.f32.mrf.mxu0
  %v488 = vadd.f32 %v97, %v487
  %489 = vmatmul.bf16.gmra.mxu0 %v221
  %v490 = vpop.f32.mrf.mxu0
  %v491 = vadd.f32 %v97, %v490
  %v492 = vpop.f32.mrf.mxu0
  %v493 = vadd.f32 %v97, %v492
  %494 = vmatmul.bf16.gmra.mxu0 %v223
  %v495 = vpop.f32.mrf.mxu0
  %v496 = vadd.f32 %v97, %v495
  %v497 = vpop.f32.mrf.mxu0
  %v498 = vadd.f32 %v97, %v497
  %499 = vmatmul.bf16.gmra.mxu0 %v225
  %v500 = vpop.f32.mrf.mxu0
  %v501 = vadd.f32 %v97, %v500
  %v502 = vpop.f32.mrf.mxu0
  %v503 = vadd.f32 %v97, %v502
  %504 = vmatmul.bf16.gmra.mxu0 %v227
  %v505 = vpop.f32.mrf.mxu0
  %v506 = vadd.f32 %v97, %v505
  %v507 = vpop.f32.mrf.mxu0
  %v508 = vadd.f32 %v97, %v507
  %509 = vdwg.mxu0
  %510 = vmatpush.bf16.msra.mxu0 %v387
  %511 = vmatpush.bf16.msra.mxu0 %v385
  %512 = vmatpush.bf16.msra.mxu0 %v383
  %513 = vmatpush.bf16.msra.mxu0 %v381
  %514 = vmatpush.bf16.msra.mxu0 %v379
  %515 = vmatpush.bf16.msra.mxu0 %v377
  %516 = vmatpush.bf16.msra.mxu0 %v375
  %517 = vmatpush.bf16.msra.mxu0 %v373
  %518 = vmatmul.bf16.gmra.mxu0 %v198
  %v519 = vpop.f32.mrf.mxu0
  %v520 = vadd.f32 %v431, %v519
  %v521 = vpop.f32.mrf.mxu0
  %v522 = vadd.f32 %v433, %v521
  %523 = vmatmul.bf16.gmra.mxu0 %v200
  %v524 = vpop.f32.mrf.mxu0
  %v525 = vadd.f32 %v436, %v524
  %v526 = vpop.f32.mrf.mxu0
  %v527 = vadd.f32 %v438, %v526
  %528 = vmatmul.bf16.gmra.mxu0 %v202
  %v529 = vpop.f32.mrf.mxu0
  %v530 = vadd.f32 %v441, %v529
  %v531 = vpop.f32.mrf.mxu0
  %v532 = vadd.f32 %v443, %v531
  %533 = vmatmul.bf16.gmra.mxu0 %v204
  %v534 = vpop.f32.mrf.mxu0
  %v535 = vadd.f32 %v446, %v534
  %v536 = vpop.f32.mrf.mxu0
  %v537 = vadd.f32 %v448, %v536
  %538 = vmatmul.bf16.gmra.mxu0 %v206
  %v539 = vpop.f32.mrf.mxu0
  %v540 = vadd.f32 %v451, %v539
  %v541 = vpop.f32.mrf.mxu0
  %v542 = vadd.f32 %v453, %v541
  %543 = vmatmul.bf16.gmra.mxu0 %v208
  %v544 = vpop.f32.mrf.mxu0
  %v545 = vadd.f32 %v456, %v544
  %v546 = vpop.f32.mrf.mxu0
  %v547 = vadd.f32 %v458, %v546
  %548 = vmatmul.bf16.gmra.mxu0 %v210
  %v549 = vpop.f32.mrf.mxu0
  %v550 = vadd.f32 %v461, %v549
  %v551 = vpop.f32.mrf.mxu0
  %v552 = vadd.f32 %v463, %v551
  %553 = vmatmul.bf16.gmra.mxu0 %v212
  %v554 = vpop.f32.mrf.mxu0
  %v555 = vadd.f32 %v466, %v554
  %v556 = vpop.f32.mrf.mxu0
  %v557 = vadd.f32 %v468, %v556
  %558 = vmatmul.bf16.gmra.mxu0 %v214
  %v559 = vpop.f32.mrf.mxu0
  %v560 = vadd.f32 %v471, %v559
  %v561 = vpop.f32.mrf.mxu0
  %v562 = vadd.f32 %v473, %v561
  %563 = vmatmul.bf16.gmra.mxu0 %v216
  %v564 = vpop.f32.mrf.mxu0
  %v565 = vadd.f32 %v476, %v564
  %v566 = vpop.f32.mrf.mxu0
  %v567 = vadd.f32 %v478, %v566
  %568 = vmatmul.bf16.gmra.mxu0 %v218
  %v569 = vpop.f32.mrf.mxu0
  %v570 = vadd.f32 %v481, %v569
  %v571 = vpop.f32.mrf.mxu0
  %v572 = vadd.f32 %v483, %v571
  %573 = vmatmul.bf16.gmra.mxu0 %v220
  %v574 = vpop.f32.mrf.mxu0
  %v575 = vadd.f32 %v486, %v574
  %v576 = vpop.f32.mrf.mxu0
  %v577 = vadd.f32 %v488, %v576
  %578 = vmatmul.bf16.gmra.mxu0 %v222
  %v579 = vpop.f32.mrf.mxu0
  %v580 = vadd.f32 %v491, %v579
  %v581 = vpop.f32.mrf.mxu0
  %v582 = vadd.f32 %v493, %v581
  %583 = vmatmul.bf16.gmra.mxu0 %v224
  %v584 = vpop.f32.mrf.mxu0
  %v585 = vadd.f32 %v496, %v584
  %v586 = vpop.f32.mrf.mxu0
  %v587 = vadd.f32 %v498, %v586
  %588 = vmatmul.bf16.gmra.mxu0 %v226
  %v589 = vpop.f32.mrf.mxu0
  %v590 = vadd.f32 %v501, %v589
  %v591 = vpop.f32.mrf.mxu0
  %v592 = vadd.f32 %v503, %v591
  %593 = vmatmul.bf16.gmra.mxu0 %v228
  %v594 = vpop.f32.mrf.mxu0
  %v595 = vadd.f32 %v506, %v594
  %v596 = vpop.f32.mrf.mxu0
  %v597 = vadd.f32 %v508, %v596
  %598 = vdwg.mxu0
  %599 = vmatpush.bf16.msra.mxu0 %v372
  %600 = vmatpush.bf16.msra.mxu0 %v370
  %601 = vmatpush.bf16.msra.mxu0 %v368
  %602 = vmatpush.bf16.msra.mxu0 %v366
  %603 = vmatpush.bf16.msra.mxu0 %v364
  %604 = vmatpush.bf16.msra.mxu0 %v362
  %605 = vmatpush.bf16.msra.mxu0 %v360
  %606 = vmatpush.bf16.msra.mxu0 %v358
  %607 = vmatmul.bf16.gmra.mxu0 %v197
  %v608 = vpop.f32.mrf.mxu0
  %v609 = vadd.f32 %v98, %v608
  %v610 = vpop.f32.mrf.mxu0
  %v611 = vadd.f32 %v98, %v610
  %612 = vmatmul.bf16.gmra.mxu0 %v199
  %v613 = vpop.f32.mrf.mxu0
  %v614 = vadd.f32 %v98, %v613
  %v615 = vpop.f32.mrf.mxu0
  %v616 = vadd.f32 %v98, %v615
  %617 = vmatmul.bf16.gmra.mxu0 %v201
  %v618 = vpop.f32.mrf.mxu0
  %v619 = vadd.f32 %v98, %v618
  %v620 = vpop.f32.mrf.mxu0
  %v621 = vadd.f32 %v98, %v620
  %622 = vmatmul.bf16.gmra.mxu0 %v203
  %v623 = vpop.f32.mrf.mxu0
  %v624 = vadd.f32 %v98, %v623
  %v625 = vpop.f32.mrf.mxu0
  %v626 = vadd.f32 %v98, %v625
  %627 = vmatmul.bf16.gmra.mxu0 %v205
  %v628 = vpop.f32.mrf.mxu0
  %v629 = vadd.f32 %v98, %v628
  %v630 = vpop.f32.mrf.mxu0
  %v631 = vadd.f32 %v98, %v630
  %632 = vmatmul.bf16.gmra.mxu0 %v207
  %v633 = vpop.f32.mrf.mxu0
  %v634 = vadd.f32 %v98, %v633
  %v635 = vpop.f32.mrf.mxu0
  %v636 = vadd.f32 %v98, %v635
  %637 = vmatmul.bf16.gmra.mxu0 %v209
  %v638 = vpop.f32.mrf.mxu0
  %v639 = vadd.f32 %v98, %v638
  %v640 = vpop.f32.mrf.mxu0
  %v641 = vadd.f32 %v98, %v640
  %642 = vmatmul.bf16.gmra.mxu0 %v211
  %v643 = vpop.f32.mrf.mxu0
  %v644 = vadd.f32 %v98, %v643
  %v645 = vpop.f32.mrf.mxu0
  %v646 = vadd.f32 %v98, %v645
  %647 = vmatmul.bf16.gmra.mxu0 %v213
  %v648 = vpop.f32.mrf.mxu0
  %v649 = vadd.f32 %v98, %v648
  %v650 = vpop.f32.mrf.mxu0
  %v651 = vadd.f32 %v98, %v650
  %652 = vmatmul.bf16.gmra.mxu0 %v215
  %v653 = vpop.f32.mrf.mxu0
  %v654 = vadd.f32 %v98, %v653
  %v655 = vpop.f32.mrf.mxu0
  %v656 = vadd.f32 %v98, %v655
  %657 = vmatmul.bf16.gmra.mxu0 %v217
  %v658 = vpop.f32.mrf.mxu0
  %v659 = vadd.f32 %v98, %v658
  %v660 = vpop.f32.mrf.mxu0
  %v661 = vadd.f32 %v98, %v660
  %662 = vmatmul.bf16.gmra.mxu0 %v219
  %v663 = vpop.f32.mrf.mxu0
  %v664 = vadd.f32 %v98, %v663
  %v665 = vpop.f32.mrf.mxu0
  %v666 = vadd.f32 %v98, %v665
  %667 = vmatmul.bf16.gmra.mxu0 %v221
  %v668 = vpop.f32.mrf.mxu0
  %v669 = vadd.f32 %v98, %v668
  %v670 = vpop.f32.mrf.mxu0
  %v671 = vadd.f32 %v98, %v670
  %672 = vmatmul.bf16.gmra.mxu0 %v223
  %v673 = vpop.f32.mrf.mxu0
  %v674 = vadd.f32 %v98, %v673
  %v675 = vpop.f32.mrf.mxu0
  %v676 = vadd.f32 %v98, %v675
  %677 = vmatmul.bf16.gmra.mxu0 %v225
  %v678 = vpop.f32.mrf.mxu0
  %v679 = vadd.f32 %v98, %v678
  %v680 = vpop.f32.mrf.mxu0
  %v681 = vadd.f32 %v98, %v680
  %682 = vmatmul.bf16.gmra.mxu0 %v227
  %v683 = vpop.f32.mrf.mxu0
  %v684 = vadd.f32 %v98, %v683
  %v685 = vpop.f32.mrf.mxu0
  %v686 = vadd.f32 %v98, %v685
  %687 = vdwg.mxu0
  %688 = vmatpush.bf16.msra.mxu0 %v388
  %689 = vmatpush.bf16.msra.mxu0 %v386
  %690 = vmatpush.bf16.msra.mxu0 %v384
  %691 = vmatpush.bf16.msra.mxu0 %v382
  %692 = vmatpush.bf16.msra.mxu0 %v380
  %693 = vmatpush.bf16.msra.mxu0 %v378
  %694 = vmatpush.bf16.msra.mxu0 %v376
  %695 = vmatpush.bf16.msra.mxu0 %v374
  %696 = vmatmul.bf16.gmra.mxu0 %v198
  %v697 = vpop.f32.mrf.mxu0
  %v698 = vadd.f32 %v609, %v697
  %v699 = vpop.f32.mrf.mxu0
  %v700 = vadd.f32 %v611, %v699
  %701 = vmatmul.bf16.gmra.mxu0 %v200
  %v702 = vpop.f32.mrf.mxu0
  %v703 = vadd.f32 %v614, %v702
  %v704 = vpop.f32.mrf.mxu0
  %v705 = vadd.f32 %v616, %v704
  %706 = vmatmul.bf16.gmra.mxu0 %v202
  %v707 = vpop.f32.mrf.mxu0
  %v708 = vadd.f32 %v619, %v707
  %v709 = vpop.f32.mrf.mxu0
  %v710 = vadd.f32 %v621, %v709
  %711 = vmatmul.bf16.gmra.mxu0 %v204
  %v712 = vpop.f32.mrf.mxu0
  %v713 = vadd.f32 %v624, %v712
  %v714 = vpop.f32.mrf.mxu0
  %v715 = vadd.f32 %v626, %v714
  %716 = vmatmul.bf16.gmra.mxu0 %v206
  %v717 = vpop.f32.mrf.mxu0
  %v718 = vadd.f32 %v629, %v717
  %v719 = vpop.f32.mrf.mxu0
  %v720 = vadd.f32 %v631, %v719
  %721 = vmatmul.bf16.gmra.mxu0 %v208
  %v722 = vpop.f32.mrf.mxu0
  %v723 = vadd.f32 %v634, %v722
  %v724 = vpop.f32.mrf.mxu0
  %v725 = vadd.f32 %v636, %v724
  %726 = vmatmul.bf16.gmra.mxu0 %v210
  %v727 = vpop.f32.mrf.mxu0
  %v728 = vadd.f32 %v639, %v727
  %v729 = vpop.f32.mrf.mxu0
  %v730 = vadd.f32 %v641, %v729
  %731 = vmatmul.bf16.gmra.mxu0 %v212
  %v732 = vpop.f32.mrf.mxu0
  %v733 = vadd.f32 %v644, %v732
  %v734 = vpop.f32.mrf.mxu0
  %v735 = vadd.f32 %v646, %v734
  %736 = vmatmul.bf16.gmra.mxu0 %v214
  %v737 = vpop.f32.mrf.mxu0
  %v738 = vadd.f32 %v649, %v737
  %v739 = vpop.f32.mrf.mxu0
  %v740 = vadd.f32 %v651, %v739
  %741 = vmatmul.bf16.gmra.mxu0 %v216
  %v742 = vpop.f32.mrf.mxu0
  %v743 = vadd.f32 %v654, %v742
  %v744 = vpop.f32.mrf.mxu0
  %v745 = vadd.f32 %v656, %v744
  %746 = vmatmul.bf16.gmra.mxu0 %v218
  %v747 = vpop.f32.mrf.mxu0
  %v748 = vadd.f32 %v659, %v747
  %v749 = vpop.f32.mrf.mxu0
  %v750 = vadd.f32 %v661, %v749
  %751 = vmatmul.bf16.gmra.mxu0 %v220
  %v752 = vpop.f32.mrf.mxu0
  %v753 = vadd.f32 %v664, %v752
  %v754 = vpop.f32.mrf.mxu0
  %v755 = vadd.f32 %v666, %v754
  %756 = vmatmul.bf16.gmra.mxu0 %v222
  %v757 = vpop.f32.mrf.mxu0
  %v758 = vadd.f32 %v669, %v757
  %v759 = vpop.f32.mrf.mxu0
  %v760 = vadd.f32 %v671, %v759
  %761 = vmatmul.bf16.gmra.mxu0 %v224
  %v762 = vpop.f32.mrf.mxu0
  %v763 = vadd.f32 %v674, %v762
  %v764 = vpop.f32.mrf.mxu0
  %v765 = vadd.f32 %v676, %v764
  %766 = vmatmul.bf16.gmra.mxu0 %v226
  %v767 = vpop.f32.mrf.mxu0
  %v768 = vadd.f32 %v679, %v767
  %v769 = vpop.f32.mrf.mxu0
  %v770 = vadd.f32 %v681, %v769
  %771 = vmatmul.bf16.gmra.mxu0 %v228
  %v772 = vpop.f32.mrf.mxu0
  %v773 = vadd.f32 %v684, %v772
  %v774 = vpop.f32.mrf.mxu0
  %v775 = vadd.f32 %v686, %v774
  %776 = vdwg.mxu0
  %v777 = vmax.f32 %v520, 0.0
  %v778 = vmax.f32 %v698, 0.0
  %v779 = vmax.f32 %v522, 0.0
  %v780 = vmax.f32 %v700, 0.0
  %v781 = vmax.f32 %v525, 0.0
  %v782 = vmax.f32 %v703, 0.0
  %v783 = vmax.f32 %v527, 0.0
  %v784 = vmax.f32 %v705, 0.0
  %v785 = vmax.f32 %v530, 0.0
  %v786 = vmax.f32 %v708, 0.0
  %v787 = vmax.f32 %v532, 0.0
  %v788 = vmax.f32 %v710, 0.0
  %v789 = vmax.f32 %v535, 0.0
  %v790 = vmax.f32 %v713, 0.0
  %v791 = vmax.f32 %v537, 0.0
  %v792 = vmax.f32 %v715, 0.0
  %v793 = vmax.f32 %v540, 0.0
  %v794 = vmax.f32 %v718, 0.0
  %v795 = vmax.f32 %v542, 0.0
  %v796 = vmax.f32 %v720, 0.0
  %v797 = vmax.f32 %v545, 0.0
  %v798 = vmax.f32 %v723, 0.0
  %v799 = vmax.f32 %v547, 0.0
  %v800 = vmax.f32 %v725, 0.0
  %v801 = vmax.f32 %v550, 0.0
  %v802 = vmax.f32 %v728, 0.0
  %v803 = vmax.f32 %v552, 0.0
  %v804 = vmax.f32 %v730, 0.0
  %v805 = vmax.f32 %v555, 0.0
  %v806 = vmax.f32 %v733, 0.0
  %v807 = vmax.f32 %v557, 0.0
  %v808 = vmax.f32 %v735, 0.0
  %v809 = vmax.f32 %v560, 0.0
  %v810 = vmax.f32 %v738, 0.0
  %v811 = vmax.f32 %v562, 0.0
  %v812 = vmax.f32 %v740, 0.0
  %v813 = vmax.f32 %v565, 0.0
  %v814 = vmax.f32 %v743, 0.0
  %v815 = vmax.f32 %v567, 0.0
  %v816 = vmax.f32 %v745, 0.0
  %v817 = vmax.f32 %v570, 0.0
  %v818 = vmax.f32 %v748, 0.0
  %v819 = vmax.f32 %v572, 0.0
  %v820 = vmax.f32 %v750, 0.0
  %v821 = vmax.f32 %v575, 0.0
  %v822 = vmax.f32 %v753, 0.0
  %v823 = vmax.f32 %v577, 0.0
  %v824 = vmax.f32 %v755, 0.0
  %v825 = vmax.f32 %v580, 0.0
  %v826 = vmax.f32 %v758, 0.0
  %v827 = vmax.f32 %v582, 0.0
  %v828 = vmax.f32 %v760, 0.0
  %v829 = vmax.f32 %v585, 0.0
  %v830 = vmax.f32 %v763, 0.0
  %v831 = vmax.f32 %v587, 0.0
  %v832 = vmax.f32 %v765, 0.0
  %v833 = vmax.f32 %v590, 0.0
  %v834 = vmax.f32 %v768, 0.0
  %v835 = vmax.f32 %v592, 0.0
  %v836 = vmax.f32 %v770, 0.0
  %v837 = vmax.f32 %v595, 0.0
  %v838 = vmax.f32 %v773, 0.0
  %v839 = vmax.f32 %v597, 0.0
  %v840 = vmax.f32 %v775, 0.0
  %v841 = vpack.c.bf16 %v779, %v777
  %v842 = vpack.c.bf16 %v780, %v778
  %v843 = vpack.c.bf16 %v783, %v781
  %v844 = vpack.c.bf16 %v784, %v782
  %v845 = vpack.c.bf16 %v787, %v785
  %v846 = vpack.c.bf16 %v788, %v786
  %v847 = vpack.c.bf16 %v791, %v789
  %v848 = vpack.c.bf16 %v792, %v790
  %v849 = vpack.c.bf16 %v795, %v793
  %v850 = vpack.c.bf16 %v796, %v794
  %v851 = vpack.c.bf16 %v799, %v797
  %v852 = vpack.c.bf16 %v800, %v798
  %v853 = vpack.c.bf16 %v803, %v801
  %v854 = vpack.c.bf16 %v804, %v802
  %v855 = vpack.c.bf16 %v807, %v805
  %v856 = vpack.c.bf16 %v808, %v806
  %v857 = vpack.c.bf16 %v811, %v809
  %v858 = vpack.c.bf16 %v812, %v810
  %v859 = vpack.c.bf16 %v815, %v813
  %v860 = vpack.c.bf16 %v816, %v814
  %v861 = vpack.c.bf16 %v819, %v817
  %v862 = vpack.c.bf16 %v820, %v818
  %v863 = vpack.c.bf16 %v823, %v821
  %v864 = vpack.c.bf16 %v824, %v822
  %v865 = vpack.c.bf16 %v827, %v825
  %v866 = vpack.c.bf16 %v828, %v826
  %v867 = vpack.c.bf16 %v831, %v829
  %v868 = vpack.c.bf16 %v832, %v830
  %v869 = vpack.c.bf16 %v835, %v833
  %v870 = vpack.c.bf16 %v836, %v834
  %v871 = vpack.c.bf16 %v839, %v837
  %v872 = vpack.c.bf16 %v840, %v838
  %v873 = vld [vmem:[%s3] sm:$0xff]
  %v874 = vld [vmem:[%s3 + $0x8] sm:$0xff]
  %v875 = vld [vmem:[%s3 + $0x10] sm:$0xff]
  %v876 = vld [vmem:[%s3 + $0x18] sm:$0xff]
  %v877 = vld [vmem:[%s3 + $0x20] sm:$0xff]
  %v878 = vld [vmem:[%s3 + $0x28] sm:$0xff]
  %v879 = vld [vmem:[%s3 + $0x30] sm:$0xff]
  %v880 = vld [vmem:[%s3 + $0x38] sm:$0xff]
  %v881 = vld [vmem:[%s3 + $0x40] sm:$0xff]
  %v882 = vld [vmem:[%s3 + $0x48] sm:$0xff]
  %v883 = vld [vmem:[%s3 + $0x50] sm:$0xff]
  %v884 = vld [vmem:[%s3 + $0x58] sm:$0xff]
  %v885 = vld [vmem:[%s3 + $0x60] sm:$0xff]
  %v886 = vld [vmem:[%s3 + $0x68] sm:$0xff]
  %v887 = vld [vmem:[%s3 + $0x70] sm:$0xff]
  %v888 = vld [vmem:[%s3 + $0x78] sm:$0xff]
  %v889 = vld [vmem:[%s3 + $0x80] sm:$0xff]
  %v890 = vld [vmem:[%s3 + $0x88] sm:$0xff]
  %v891 = vld [vmem:[%s3 + $0x90] sm:$0xff]
  %v892 = vld [vmem:[%s3 + $0x98] sm:$0xff]
  %v893 = vld [vmem:[%s3 + $0xa0] sm:$0xff]
  %v894 = vld [vmem:[%s3 + $0xa8] sm:$0xff]
  %v895 = vld [vmem:[%s3 + $0xb0] sm:$0xff]
  %v896 = vld [vmem:[%s3 + $0xb8] sm:$0xff]
  %v897 = vld [vmem:[%s3 + $0xc0] sm:$0xff]
  %v898 = vld [vmem:[%s3 + $0xc8] sm:$0xff]
  %v899 = vld [vmem:[%s3 + $0xd0] sm:$0xff]
  %v900 = vld [vmem:[%s3 + $0xd8] sm:$0xff]
  %v901 = vld [vmem:[%s3 + $0xe0] sm:$0xff]
  %v902 = vld [vmem:[%s3 + $0xe8] sm:$0xff]
  %v903 = vld [vmem:[%s3 + $0xf0] sm:$0xff]
  %v904 = vld [vmem:[%s3 + $0xf8] sm:$0xff]
  %v905 = vld [vmem:[%s4] sm:$0x3]
  %v907 = vperm.slane %v905, 0
  %v908 = vperm.slane %v905, 1
  %v943 = vunpack.c.l.b16 %v873
  %v944 = vunpack.c.h.b16 %v873
  %v945 = vunpack.c.l.b16 %v874
  %v946 = vunpack.c.h.b16 %v874
  %v947 = vunpack.c.l.b16 %v875
  %v948 = vunpack.c.h.b16 %v875
  %v949 = vunpack.c.l.b16 %v876
  %v950 = vunpack.c.h.b16 %v876
  %v951 = vunpack.c.l.b16 %v877
  %v952 = vunpack.c.h.b16 %v877
  %v953 = vunpack.c.l.b16 %v878
  %v954 = vunpack.c.h.b16 %v878
  %v955 = vunpack.c.l.b16 %v879
  %v956 = vunpack.c.h.b16 %v879
  %v957 = vunpack.c.l.b16 %v880
  %v958 = vunpack.c.h.b16 %v880
  %v959 = vunpack.c.l.b16 %v881
  %v960 = vunpack.c.h.b16 %v881
  %v961 = vunpack.c.l.b16 %v882
  %v962 = vunpack.c.h.b16 %v882
  %v963 = vunpack.c.l.b16 %v883
  %v964 = vunpack.c.h.b16 %v883
  %v965 = vunpack.c.l.b16 %v884
  %v966 = vunpack.c.h.b16 %v884
  %v967 = vunpack.c.l.b16 %v885
  %v968 = vunpack.c.h.b16 %v885
  %v969 = vunpack.c.l.b16 %v886
  %v970 = vunpack.c.h.b16 %v886
  %v971 = vunpack.c.l.b16 %v887
  %v972 = vunpack.c.h.b16 %v887
  %v973 = vunpack.c.l.b16 %v888
  %v974 = vunpack.c.h.b16 %v888
  %v975 = vunpack.c.l.b16 %v889
  %v976 = vunpack.c.h.b16 %v889
  %v977 = vunpack.c.l.b16 %v890
  %v978 = vunpack.c.h.b16 %v890
  %v979 = vunpack.c.l.b16 %v891
  %v980 = vunpack.c.h.b16 %v891
  %v981 = vunpack.c.l.b16 %v892
  %v982 = vunpack.c.h.b16 %v892
  %v983 = vunpack.c.l.b16 %v893
  %v984 = vunpack.c.h.b16 %v893
  %v985 = vunpack.c.l.b16 %v894
  %v986 = vunpack.c.h.b16 %v894
  %v987 = vunpack.c.l.b16 %v895
  %v988 = vunpack.c.h.b16 %v895
  %v989 = vunpack.c.l.b16 %v896
  %v990 = vunpack.c.h.b16 %v896
  %v991 = vunpack.c.l.b16 %v897
  %v992 = vunpack.c.h.b16 %v897
  %v993 = vunpack.c.l.b16 %v898
  %v994 = vunpack.c.h.b16 %v898
  %v995 = vunpack.c.l.b16 %v899
  %v996 = vunpack.c.h.b16 %v899
  %v997 = vunpack.c.l.b16 %v900
  %v998 = vunpack.c.h.b16 %v900
  %v999 = vunpack.c.l.b16 %v901
  %v1000 = vunpack.c.h.b16 %v901
  %v1001 = vunpack.c.l.b16 %v902
  %v1002 = vunpack.c.h.b16 %v902
  %v1003 = vunpack.c.l.b16 %v903
  %v1004 = vunpack.c.h.b16 %v903
  %v1005 = vunpack.c.l.b16 %v904
  %v1006 = vunpack.c.h.b16 %v904
  %v1007 = vpack.c.b16 %v945, %v943
  %v1008 = vpack.c.b16 %v946, %v944
  %v1009 = vpack.c.b16 %v949, %v947
  %v1010 = vpack.c.b16 %v950, %v948
  %v1011 = vpack.c.b16 %v953, %v951
  %v1012 = vpack.c.b16 %v954, %v952
  %v1013 = vpack.c.b16 %v957, %v955
  %v1014 = vpack.c.b16 %v958, %v956
  %v1015 = vpack.c.b16 %v961, %v959
  %v1016 = vpack.c.b16 %v962, %v960
  %v1017 = vpack.c.b16 %v965, %v963
  %v1018 = vpack.c.b16 %v966, %v964
  %v1019 = vpack.c.b16 %v969, %v967
  %v1020 = vpack.c.b16 %v970, %v968
  %v1021 = vpack.c.b16 %v973, %v971
  %v1022 = vpack.c.b16 %v974, %v972
  %v1023 = vpack.c.b16 %v977, %v975
  %v1024 = vpack.c.b16 %v978, %v976
  %v1025 = vpack.c.b16 %v981, %v979
  %v1026 = vpack.c.b16 %v982, %v980
  %v1027 = vpack.c.b16 %v985, %v983
  %v1028 = vpack.c.b16 %v986, %v984
  %v1029 = vpack.c.b16 %v989, %v987
  %v1030 = vpack.c.b16 %v990, %v988
  %v1031 = vpack.c.b16 %v993, %v991
  %v1032 = vpack.c.b16 %v994, %v992
  %v1033 = vpack.c.b16 %v997, %v995
  %v1034 = vpack.c.b16 %v998, %v996
  %v1035 = vpack.c.b16 %v1001, %v999
  %v1036 = vpack.c.b16 %v1002, %v1000
  %v1037 = vpack.c.b16 %v1005, %v1003
  %v1038 = vpack.c.b16 %v1006, %v1004
  %1071 = vmatpush.bf16.msra.mxu0 %v1021
  %1072 = vmatpush.bf16.msra.mxu0 %v1019
  %1073 = vmatpush.bf16.msra.mxu0 %v1017
  %1074 = vmatpush.bf16.msra.mxu0 %v1015
  %1075 = vmatpush.bf16.msra.mxu0 %v1013
  %1076 = vmatpush.bf16.msra.mxu0 %v1011
  %1077 = vmatpush.bf16.msra.mxu0 %v1009
  %1078 = vmatpush.bf16.msra.mxu0 %v1007
  %1079 = vmatmul.bf16.gmra.mxu0 %v841
  %v1080 = vpop.f32.mrf.mxu0
  %v1081 = vadd.f32 %v907, %v1080
  %v1082 = vpop.f32.mrf.mxu0
  %v1083 = vadd.f32 %v907, %v1082
  %1084 = vmatmul.bf16.gmra.mxu0 %v843
  %v1085 = vpop.f32.mrf.mxu0
  %v1086 = vadd.f32 %v907, %v1085
  %v1087 = vpop.f32.mrf.mxu0
  %v1088 = vadd.f32 %v907, %v1087
  %1089 = vmatmul.bf16.gmra.mxu0 %v845
  %v1090 = vpop.f32.mrf.mxu0
  %v1091 = vadd.f32 %v907, %v1090
  %v1092 = vpop.f32.mrf.mxu0
  %v1093 = vadd.f32 %v907, %v1092
  %1094 = vmatmul.bf16.gmra.mxu0 %v847
  %v1095 = vpop.f32.mrf.mxu0
  %v1096 = vadd.f32 %v907, %v1095
  %v1097 = vpop.f32.mrf.mxu0
  %v1098 = vadd.f32 %v907, %v1097
  %1099 = vmatmul.bf16.gmra.mxu0 %v849
  %v1100 = vpop.f32.mrf.mxu0
  %v1101 = vadd.f32 %v907, %v1100
  %v1102 = vpop.f32.mrf.mxu0
  %v1103 = vadd.f32 %v907, %v1102
  %1104 = vmatmul.bf16.gmra.mxu0 %v851
  %v1105 = vpop.f32.mrf.mxu0
  %v1106 = vadd.f32 %v907, %v1105
  %v1107 = vpop.f32.mrf.mxu0
  %v1108 = vadd.f32 %v907, %v1107
  %1109 = vmatmul.bf16.gmra.mxu0 %v853
  %v1110 = vpop.f32.mrf.mxu0
  %v1111 = vadd.f32 %v907, %v1110
  %v1112 = vpop.f32.mrf.mxu0
  %v1113 = vadd.f32 %v907, %v1112
  %1114 = vmatmul.bf16.gmra.mxu0 %v855
  %v1115 = vpop.f32.mrf.mxu0
  %v1116 = vadd.f32 %v907, %v1115
  %v1117 = vpop.f32.mrf.mxu0
  %v1118 = vadd.f32 %v907, %v1117
  %1119 = vmatmul.bf16.gmra.mxu0 %v857
  %v1120 = vpop.f32.mrf.mxu0
  %v1121 = vadd.f32 %v907, %v1120
  %v1122 = vpop.f32.mrf.mxu0
  %v1123 = vadd.f32 %v907, %v1122
  %1124 = vmatmul.bf16.gmra.mxu0 %v859
  %v1125 = vpop.f32.mrf.mxu0
  %v1126 = vadd.f32 %v907, %v1125
  %v1127 = vpop.f32.mrf.mxu0
  %v1128 = vadd.f32 %v907, %v1127
  %1129 = vmatmul.bf16.gmra.mxu0 %v861
  %v1130 = vpop.f32.mrf.mxu0
  %v1131 = vadd.f32 %v907, %v1130
  %v1132 = vpop.f32.mrf.mxu0
  %v1133 = vadd.f32 %v907, %v1132
  %1134 = vmatmul.bf16.gmra.mxu0 %v863
  %v1135 = vpop.f32.mrf.mxu0
  %v1136 = vadd.f32 %v907, %v1135
  %v1137 = vpop.f32.mrf.mxu0
  %v1138 = vadd.f32 %v907, %v1137
  %1139 = vmatmul.bf16.gmra.mxu0 %v865
  %v1140 = vpop.f32.mrf.mxu0
  %v1141 = vadd.f32 %v907, %v1140
  %v1142 = vpop.f32.mrf.mxu0
  %v1143 = vadd.f32 %v907, %v1142
  %1144 = vmatmul.bf16.gmra.mxu0 %v867
  %v1145 = vpop.f32.mrf.mxu0
  %v1146 = vadd.f32 %v907, %v1145
  %v1147 = vpop.f32.mrf.mxu0
  %v1148 = vadd.f32 %v907, %v1147
  %1149 = vmatmul.bf16.gmra.mxu0 %v869
  %v1150 = vpop.f32.mrf.mxu0
  %v1151 = vadd.f32 %v907, %v1150
  %v1152 = vpop.f32.mrf.mxu0
  %v1153 = vadd.f32 %v907, %v1152
  %1154 = vmatmul.bf16.gmra.mxu0 %v871
  %v1155 = vpop.f32.mrf.mxu0
  %v1156 = vadd.f32 %v907, %v1155
  %v1157 = vpop.f32.mrf.mxu0
  %v1158 = vadd.f32 %v907, %v1157
  %1159 = vdwg.mxu0
  %1160 = vmatpush.bf16.msra.mxu0 %v1037
  %1161 = vmatpush.bf16.msra.mxu0 %v1035
  %1162 = vmatpush.bf16.msra.mxu0 %v1033
  %1163 = vmatpush.bf16.msra.mxu0 %v1031
  %1164 = vmatpush.bf16.msra.mxu0 %v1029
  %1165 = vmatpush.bf16.msra.mxu0 %v1027
  %1166 = vmatpush.bf16.msra.mxu0 %v1025
  %1167 = vmatpush.bf16.msra.mxu0 %v1023
  %1168 = vmatmul.bf16.gmra.mxu0 %v842
  %v1169 = vpop.f32.mrf.mxu0
  %v1170 = vadd.f32 %v1081, %v1169
  %v1171 = vpop.f32.mrf.mxu0
  %v1172 = vadd.f32 %v1083, %v1171
  %1173 = vmatmul.bf16.gmra.mxu0 %v844
  %v1174 = vpop.f32.mrf.mxu0
  %v1175 = vadd.f32 %v1086, %v1174
  %v1176 = vpop.f32.mrf.mxu0
  %v1177 = vadd.f32 %v1088, %v1176
  %1178 = vmatmul.bf16.gmra.mxu0 %v846
  %v1179 = vpop.f32.mrf.mxu0
  %v1180 = vadd.f32 %v1091, %v1179
  %v1181 = vpop.f32.mrf.mxu0
  %v1182 = vadd.f32 %v1093, %v1181
  %1183 = vmatmul.bf16.gmra.mxu0 %v848
  %v1184 = vpop.f32.mrf.mxu0
  %v1185 = vadd.f32 %v1096, %v1184
  %v1186 = vpop.f32.mrf.mxu0
  %v1187 = vadd.f32 %v1098, %v1186
  %1188 = vmatmul.bf16.gmra.mxu0 %v850
  %v1189 = vpop.f32.mrf.mxu0
  %v1190 = vadd.f32 %v1101, %v1189
  %v1191 = vpop.f32.mrf.mxu0
  %v1192 = vadd.f32 %v1103, %v1191
  %1193 = vmatmul.bf16.gmra.mxu0 %v852
  %v1194 = vpop.f32.mrf.mxu0
  %v1195 = vadd.f32 %v1106, %v1194
  %v1196 = vpop.f32.mrf.mxu0
  %v1197 = vadd.f32 %v1108, %v1196
  %1198 = vmatmul.bf16.gmra.mxu0 %v854
  %v1199 = vpop.f32.mrf.mxu0
  %v1200 = vadd.f32 %v1111, %v1199
  %v1201 = vpop.f32.mrf.mxu0
  %v1202 = vadd.f32 %v1113, %v1201
  %1203 = vmatmul.bf16.gmra.mxu0 %v856
  %v1204 = vpop.f32.mrf.mxu0
  %v1205 = vadd.f32 %v1116, %v1204
  %v1206 = vpop.f32.mrf.mxu0
  %v1207 = vadd.f32 %v1118, %v1206
  %1208 = vmatmul.bf16.gmra.mxu0 %v858
  %v1209 = vpop.f32.mrf.mxu0
  %v1210 = vadd.f32 %v1121, %v1209
  %v1211 = vpop.f32.mrf.mxu0
  %v1212 = vadd.f32 %v1123, %v1211
  %1213 = vmatmul.bf16.gmra.mxu0 %v860
  %v1214 = vpop.f32.mrf.mxu0
  %v1215 = vadd.f32 %v1126, %v1214
  %v1216 = vpop.f32.mrf.mxu0
  %v1217 = vadd.f32 %v1128, %v1216
  %1218 = vmatmul.bf16.gmra.mxu0 %v862
  %v1219 = vpop.f32.mrf.mxu0
  %v1220 = vadd.f32 %v1131, %v1219
  %v1221 = vpop.f32.mrf.mxu0
  %v1222 = vadd.f32 %v1133, %v1221
  %1223 = vmatmul.bf16.gmra.mxu0 %v864
  %v1224 = vpop.f32.mrf.mxu0
  %v1225 = vadd.f32 %v1136, %v1224
  %v1226 = vpop.f32.mrf.mxu0
  %v1227 = vadd.f32 %v1138, %v1226
  %1228 = vmatmul.bf16.gmra.mxu0 %v866
  %v1229 = vpop.f32.mrf.mxu0
  %v1230 = vadd.f32 %v1141, %v1229
  %v1231 = vpop.f32.mrf.mxu0
  %v1232 = vadd.f32 %v1143, %v1231
  %1233 = vmatmul.bf16.gmra.mxu0 %v868
  %v1234 = vpop.f32.mrf.mxu0
  %v1235 = vadd.f32 %v1146, %v1234
  %v1236 = vpop.f32.mrf.mxu0
  %v1237 = vadd.f32 %v1148, %v1236
  %1238 = vmatmul.bf16.gmra.mxu0 %v870
  %v1239 = vpop.f32.mrf.mxu0
  %v1240 = vadd.f32 %v1151, %v1239
  %v1241 = vpop.f32.mrf.mxu0
  %v1242 = vadd.f32 %v1153, %v1241
  %1243 = vmatmul.bf16.gmra.mxu0 %v872
  %v1244 = vpop.f32.mrf.mxu0
  %v1245 = vadd.f32 %v1156, %v1244
  %v1246 = vpop.f32.mrf.mxu0
  %v1247 = vadd.f32 %v1158, %v1246
  %1248 = vdwg.mxu0
  %1249 = vmatpush.bf16.msra.mxu0 %v1022
  %1250 = vmatpush.bf16.msra.mxu0 %v1020
  %1251 = vmatpush.bf16.msra.mxu0 %v1018
  %1252 = vmatpush.bf16.msra.mxu0 %v1016
  %1253 = vmatpush.bf16.msra.mxu0 %v1014
  %1254 = vmatpush.bf16.msra.mxu0 %v1012
  %1255 = vmatpush.bf16.msra.mxu0 %v1010
  %1256 = vmatpush.bf16.msra.mxu0 %v1008
  %1257 = vmatmul.bf16.gmra.mxu0 %v841
  %v1258 = vpop.f32.mrf.mxu0
  %v1259 = vadd.f32 %v908, %v1258
  %v1260 = vpop.f32.mrf.mxu0
  %v1261 = vadd.f32 %v908, %v1260
  %1262 = vmatmul.bf16.gmra.mxu0 %v843
  %v1263 = vpop.f32.mrf.mxu0
  %v1264 = vadd.f32 %v908, %v1263
  %v1265 = vpop.f32.mrf.mxu0
  %v1266 = vadd.f32 %v908, %v1265
  %1267 = vmatmul.bf16.gmra.mxu0 %v845
  %v1268 = vpop.f32.mrf.mxu0
  %v1269 = vadd.f32 %v908, %v1268
  %v1270 = vpop.f32.mrf.mxu0
  %v1271 = vadd.f32 %v908, %v1270
  %1272 = vmatmul.bf16.gmra.mxu0 %v847
  %v1273 = vpop.f32.mrf.mxu0
  %v1274 = vadd.f32 %v908, %v1273
  %v1275 = vpop.f32.mrf.mxu0
  %v1276 = vadd.f32 %v908, %v1275
  %1277 = vmatmul.bf16.gmra.mxu0 %v849
  %v1278 = vpop.f32.mrf.mxu0
  %v1279 = vadd.f32 %v908, %v1278
  %v1280 = vpop.f32.mrf.mxu0
  %v1281 = vadd.f32 %v908, %v1280
  %1282 = vmatmul.bf16.gmra.mxu0 %v851
  %v1283 = vpop.f32.mrf.mxu0
  %v1284 = vadd.f32 %v908, %v1283
  %v1285 = vpop.f32.mrf.mxu0
  %v1286 = vadd.f32 %v908, %v1285
  %1287 = vmatmul.bf16.gmra.mxu0 %v853
  %v1288 = vpop.f32.mrf.mxu0
  %v1289 = vadd.f32 %v908, %v1288
  %v1290 = vpop.f32.mrf.mxu0
  %v1291 = vadd.f32 %v908, %v1290
  %1292 = vmatmul.bf16.gmra.mxu0 %v855
  %v1293 = vpop.f32.mrf.mxu0
  %v1294 = vadd.f32 %v908, %v1293
  %v1295 = vpop.f32.mrf.mxu0
  %v1296 = vadd.f32 %v908, %v1295
  %1297 = vmatmul.bf16.gmra.mxu0 %v857
  %v1298 = vpop.f32.mrf.mxu0
  %v1299 = vadd.f32 %v908, %v1298
  %v1300 = vpop.f32.mrf.mxu0
  %v1301 = vadd.f32 %v908, %v1300
  %1302 = vmatmul.bf16.gmra.mxu0 %v859
  %v1303 = vpop.f32.mrf.mxu0
  %v1304 = vadd.f32 %v908, %v1303
  %v1305 = vpop.f32.mrf.mxu0
  %v1306 = vadd.f32 %v908, %v1305
  %1307 = vmatmul.bf16.gmra.mxu0 %v861
  %v1308 = vpop.f32.mrf.mxu0
  %v1309 = vadd.f32 %v908, %v1308
  %v1310 = vpop.f32.mrf.mxu0
  %v1311 = vadd.f32 %v908, %v1310
  %1312 = vmatmul.bf16.gmra.mxu0 %v863
  %v1313 = vpop.f32.mrf.mxu0
  %v1314 = vadd.f32 %v908, %v1313
  %v1315 = vpop.f32.mrf.mxu0
  %v1316 = vadd.f32 %v908, %v1315
  %1317 = vmatmul.bf16.gmra.mxu0 %v865
  %v1318 = vpop.f32.mrf.mxu0
  %v1319 = vadd.f32 %v908, %v1318
  %v1320 = vpop.f32.mrf.mxu0
  %v1321 = vadd.f32 %v908, %v1320
  %1322 = vmatmul.bf16.gmra.mxu0 %v867
  %v1323 = vpop.f32.mrf.mxu0
  %v1324 = vadd.f32 %v908, %v1323
  %v1325 = vpop.f32.mrf.mxu0
  %v1326 = vadd.f32 %v908, %v1325
  %1327 = vmatmul.bf16.gmra.mxu0 %v869
  %v1328 = vpop.f32.mrf.mxu0
  %v1329 = vadd.f32 %v908, %v1328
  %v1330 = vpop.f32.mrf.mxu0
  %v1331 = vadd.f32 %v908, %v1330
  %1332 = vmatmul.bf16.gmra.mxu0 %v871
  %v1333 = vpop.f32.mrf.mxu0
  %v1334 = vadd.f32 %v908, %v1333
  %v1335 = vpop.f32.mrf.mxu0
  %v1336 = vadd.f32 %v908, %v1335
  %1337 = vdwg.mxu0
  %1338 = vmatpush.bf16.msra.mxu0 %v1038
  %1339 = vmatpush.bf16.msra.mxu0 %v1036
  %1340 = vmatpush.bf16.msra.mxu0 %v1034
  %1341 = vmatpush.bf16.msra.mxu0 %v1032
  %1342 = vmatpush.bf16.msra.mxu0 %v1030
  %1343 = vmatpush.bf16.msra.mxu0 %v1028
  %1344 = vmatpush.bf16.msra.mxu0 %v1026
  %1345 = vmatpush.bf16.msra.mxu0 %v1024
  %1346 = vmatmul.bf16.gmra.mxu0 %v842
  %v1347 = vpop.f32.mrf.mxu0
  %v1348 = vadd.f32 %v1259, %v1347
  %v1349 = vpop.f32.mrf.mxu0
  %v1350 = vadd.f32 %v1261, %v1349
  %1351 = vmatmul.bf16.gmra.mxu0 %v844
  %v1352 = vpop.f32.mrf.mxu0
  %v1353 = vadd.f32 %v1264, %v1352
  %v1354 = vpop.f32.mrf.mxu0
  %v1355 = vadd.f32 %v1266, %v1354
  %1356 = vmatmul.bf16.gmra.mxu0 %v846
  %v1357 = vpop.f32.mrf.mxu0
  %v1358 = vadd.f32 %v1269, %v1357
  %v1359 = vpop.f32.mrf.mxu0
  %v1360 = vadd.f32 %v1271, %v1359
  %1361 = vmatmul.bf16.gmra.mxu0 %v848
  %v1362 = vpop.f32.mrf.mxu0
  %v1363 = vadd.f32 %v1274, %v1362
  %v1364 = vpop.f32.mrf.mxu0
  %v1365 = vadd.f32 %v1276, %v1364
  %1366 = vmatmul.bf16.gmra.mxu0 %v850
  %v1367 = vpop.f32.mrf.mxu0
  %v1368 = vadd.f32 %v1279, %v1367
  %v1369 = vpop.f32.mrf.mxu0
  %v1370 = vadd.f32 %v1281, %v1369
  %1371 = vmatmul.bf16.gmra.mxu0 %v852
  %v1372 = vpop.f32.mrf.mxu0
  %v1373 = vadd.f32 %v1284, %v1372
  %v1374 = vpop.f32.mrf.mxu0
  %v1375 = vadd.f32 %v1286, %v1374
  %1376 = vmatmul.bf16.gmra.mxu0 %v854
  %v1377 = vpop.f32.mrf.mxu0
  %v1378 = vadd.f32 %v1289, %v1377
  %v1379 = vpop.f32.mrf.mxu0
  %v1380 = vadd.f32 %v1291, %v1379
  %1381 = vmatmul.bf16.gmra.mxu0 %v856
  %v1382 = vpop.f32.mrf.mxu0
  %v1383 = vadd.f32 %v1294, %v1382
  %v1384 = vpop.f32.mrf.mxu0
  %v1385 = vadd.f32 %v1296, %v1384
  %1386 = vmatmul.bf16.gmra.mxu0 %v858
  %v1387 = vpop.f32.mrf.mxu0
  %v1388 = vadd.f32 %v1299, %v1387
  %v1389 = vpop.f32.mrf.mxu0
  %v1390 = vadd.f32 %v1301, %v1389
  %1391 = vmatmul.bf16.gmra.mxu0 %v860
  %v1392 = vpop.f32.mrf.mxu0
  %v1393 = vadd.f32 %v1304, %v1392
  %v1394 = vpop.f32.mrf.mxu0
  %v1395 = vadd.f32 %v1306, %v1394
  %1396 = vmatmul.bf16.gmra.mxu0 %v862
  %v1397 = vpop.f32.mrf.mxu0
  %v1398 = vadd.f32 %v1309, %v1397
  %v1399 = vpop.f32.mrf.mxu0
  %v1400 = vadd.f32 %v1311, %v1399
  %1401 = vmatmul.bf16.gmra.mxu0 %v864
  %v1402 = vpop.f32.mrf.mxu0
  %v1403 = vadd.f32 %v1314, %v1402
  %v1404 = vpop.f32.mrf.mxu0
  %v1405 = vadd.f32 %v1316, %v1404
  %1406 = vmatmul.bf16.gmra.mxu0 %v866
  %v1407 = vpop.f32.mrf.mxu0
  %v1408 = vadd.f32 %v1319, %v1407
  %v1409 = vpop.f32.mrf.mxu0
  %v1410 = vadd.f32 %v1321, %v1409
  %1411 = vmatmul.bf16.gmra.mxu0 %v868
  %v1412 = vpop.f32.mrf.mxu0
  %v1413 = vadd.f32 %v1324, %v1412
  %v1414 = vpop.f32.mrf.mxu0
  %v1415 = vadd.f32 %v1326, %v1414
  %1416 = vmatmul.bf16.gmra.mxu0 %v870
  %v1417 = vpop.f32.mrf.mxu0
  %v1418 = vadd.f32 %v1329, %v1417
  %v1419 = vpop.f32.mrf.mxu0
  %v1420 = vadd.f32 %v1331, %v1419
  %1421 = vmatmul.bf16.gmra.mxu0 %v872
  %v1422 = vpop.f32.mrf.mxu0
  %v1423 = vadd.f32 %v1334, %v1422
  %v1424 = vpop.f32.mrf.mxu0
  %v1425 = vadd.f32 %v1336, %v1424
  %1426 = vdwg.mxu0
  %v1427 = vmax.f32 %v1170, 0.0
  %v1428 = vmax.f32 %v1348, 0.0
  %v1429 = vmax.f32 %v1172, 0.0
  %v1430 = vmax.f32 %v1350, 0.0
  %v1431 = vmax.f32 %v1175, 0.0
  %v1432 = vmax.f32 %v1353, 0.0
  %v1433 = vmax.f32 %v1177, 0.0
  %v1434 = vmax.f32 %v1355, 0.0
  %v1435 = vmax.f32 %v1180, 0.0
  %v1436 = vmax.f32 %v1358, 0.0
  %v1437 = vmax.f32 %v1182, 0.0
  %v1438 = vmax.f32 %v1360, 0.0
  %v1439 = vmax.f32 %v1185, 0.0
  %v1440 = vmax.f32 %v1363, 0.0
  %v1441 = vmax.f32 %v1187, 0.0
  %v1442 = vmax.f32 %v1365, 0.0
  %v1443 = vmax.f32 %v1190, 0.0
  %v1444 = vmax.f32 %v1368, 0.0
  %v1445 = vmax.f32 %v1192, 0.0
  %v1446 = vmax.f32 %v1370, 0.0
  %v1447 = vmax.f32 %v1195, 0.0
  %v1448 = vmax.f32 %v1373, 0.0
  %v1449 = vmax.f32 %v1197, 0.0
  %v1450 = vmax.f32 %v1375, 0.0
  %v1451 = vmax.f32 %v1200, 0.0
  %v1452 = vmax.f32 %v1378, 0.0
  %v1453 = vmax.f32 %v1202, 0.0
  %v1454 = vmax.f32 %v1380, 0.0
  %v1455 = vmax.f32 %v1205, 0.0
  %v1456 = vmax.f32 %v1383, 0.0
  %v1457 = vmax.f32 %v1207, 0.0
  %v1458 = vmax.f32 %v1385, 0.0
  %v1459 = vmax.f32 %v1210, 0.0
  %v1460 = vmax.f32 %v1388, 0.0
  %v1461 = vmax.f32 %v1212, 0.0
  %v1462 = vmax.f32 %v1390, 0.0
  %v1463 = vmax.f32 %v1215, 0.0
  %v1464 = vmax.f32 %v1393, 0.0
  %v1465 = vmax.f32 %v1217, 0.0
  %v1466 = vmax.f32 %v1395, 0.0
  %v1467 = vmax.f32 %v1220, 0.0
  %v1468 = vmax.f32 %v1398, 0.0
  %v1469 = vmax.f32 %v1222, 0.0
  %v1470 = vmax.f32 %v1400, 0.0
  %v1471 = vmax.f32 %v1225, 0.0
  %v1472 = vmax.f32 %v1403, 0.0
  %v1473 = vmax.f32 %v1227, 0.0
  %v1474 = vmax.f32 %v1405, 0.0
  %v1475 = vmax.f32 %v1230, 0.0
  %v1476 = vmax.f32 %v1408, 0.0
  %v1477 = vmax.f32 %v1232, 0.0
  %v1478 = vmax.f32 %v1410, 0.0
  %v1479 = vmax.f32 %v1235, 0.0
  %v1480 = vmax.f32 %v1413, 0.0
  %v1481 = vmax.f32 %v1237, 0.0
  %v1482 = vmax.f32 %v1415, 0.0
  %v1483 = vmax.f32 %v1240, 0.0
  %v1484 = vmax.f32 %v1418, 0.0
  %v1485 = vmax.f32 %v1242, 0.0
  %v1486 = vmax.f32 %v1420, 0.0
  %v1487 = vmax.f32 %v1245, 0.0
  %v1488 = vmax.f32 %v1423, 0.0
  %v1489 = vmax.f32 %v1247, 0.0
  %v1490 = vmax.f32 %v1425, 0.0
  %v1491 = vpack.c.bf16 %v1429, %v1427
  %v1492 = vpack.c.bf16 %v1430, %v1428
  %v1493 = vpack.c.bf16 %v1433, %v1431
  %v1494 = vpack.c.bf16 %v1434, %v1432
  %v1495 = vpack.c.bf16 %v1437, %v1435
  %v1496 = vpack.c.bf16 %v1438, %v1436
  %v1497 = vpack.c.bf16 %v1441, %v1439
  %v1498 = vpack.c.bf16 %v1442, %v1440
  %v1499 = vpack.c.bf16 %v1445, %v1443
  %v1500 = vpack.c.bf16 %v1446, %v1444
  %v1501 = vpack.c.bf16 %v1449, %v1447
  %v1502 = vpack.c.bf16 %v1450, %v1448
  %v1503 = vpack.c.bf16 %v1453, %v1451
  %v1504 = vpack.c.bf16 %v1454, %v1452
  %v1505 = vpack.c.bf16 %v1457, %v1455
  %v1506 = vpack.c.bf16 %v1458, %v1456
  %v1507 = vpack.c.bf16 %v1461, %v1459
  %v1508 = vpack.c.bf16 %v1462, %v1460
  %v1509 = vpack.c.bf16 %v1465, %v1463
  %v1510 = vpack.c.bf16 %v1466, %v1464
  %v1511 = vpack.c.bf16 %v1469, %v1467
  %v1512 = vpack.c.bf16 %v1470, %v1468
  %v1513 = vpack.c.bf16 %v1473, %v1471
  %v1514 = vpack.c.bf16 %v1474, %v1472
  %v1515 = vpack.c.bf16 %v1477, %v1475
  %v1516 = vpack.c.bf16 %v1478, %v1476
  %v1517 = vpack.c.bf16 %v1481, %v1479
  %v1518 = vpack.c.bf16 %v1482, %v1480
  %v1519 = vpack.c.bf16 %v1485, %v1483
  %v1520 = vpack.c.bf16 %v1486, %v1484
  %v1521 = vpack.c.bf16 %v1489, %v1487
  %v1522 = vpack.c.bf16 %v1490, %v1488
  %v1523 = vld [vmem:[%s5] sm:$0xf]
  %v1524 = vld [vmem:[%s5 + $0x4] sm:$0xf]
  %v1525 = vld [vmem:[%s5 + $0x8] sm:$0xf]
  %v1526 = vld [vmem:[%s5 + $0xc] sm:$0xf]
  %v1527 = vld [vmem:[%s5 + $0x10] sm:$0xf]
  %v1528 = vld [vmem:[%s5 + $0x14] sm:$0xf]
  %v1529 = vld [vmem:[%s5 + $0x18] sm:$0xf]
  %v1530 = vld [vmem:[%s5 + $0x1c] sm:$0xf]
  %v1531 = vld [vmem:[%s5 + $0x20] sm:$0xf]
  %v1532 = vld [vmem:[%s5 + $0x24] sm:$0xf]
  %v1533 = vld [vmem:[%s5 + $0x28] sm:$0xf]
  %v1534 = vld [vmem:[%s5 + $0x2c] sm:$0xf]
  %v1535 = vld [vmem:[%s5 + $0x30] sm:$0xf]
  %v1536 = vld [vmem:[%s5 + $0x34] sm:$0xf]
  %v1537 = vld [vmem:[%s5 + $0x38] sm:$0xf]
  %v1538 = vld [vmem:[%s5 + $0x3c] sm:$0xf]
  %v1539 = vld [vmem:[%s5 + $0x40] sm:$0xf]
  %v1540 = vld [vmem:[%s5 + $0x44] sm:$0xf]
  %v1541 = vld [vmem:[%s5 + $0x48] sm:$0xf]
  %v1542 = vld [vmem:[%s5 + $0x4c] sm:$0xf]
  %v1543 = vld [vmem:[%s5 + $0x50] sm:$0xf]
  %v1544 = vld [vmem:[%s5 + $0x54] sm:$0xf]
  %v1545 = vld [vmem:[%s5 + $0x58] sm:$0xf]
  %v1546 = vld [vmem:[%s5 + $0x5c] sm:$0xf]
  %v1547 = vld [vmem:[%s5 + $0x60] sm:$0xf]
  %v1548 = vld [vmem:[%s5 + $0x64] sm:$0xf]
  %v1549 = vld [vmem:[%s5 + $0x68] sm:$0xf]
  %v1550 = vld [vmem:[%s5 + $0x6c] sm:$0xf]
  %v1551 = vld [vmem:[%s5 + $0x70] sm:$0xf]
  %v1552 = vld [vmem:[%s5 + $0x74] sm:$0xf]
  %v1553 = vld [vmem:[%s5 + $0x78] sm:$0xf]
  %v1554 = vld [vmem:[%s5 + $0x7c] sm:$0xf]
  %v1555 = vld [vmem:[%s6] sm:$0x1]
  %v1557 = vperm.slane %v1555, 0
  %v1591 = vunpack.c.l.b16 %v1523
  %v1592 = vunpack.c.l.b16 %v1524
  %v1593 = vunpack.c.l.b16 %v1525
  %v1594 = vunpack.c.l.b16 %v1526
  %v1595 = vunpack.c.l.b16 %v1527
  %v1596 = vunpack.c.l.b16 %v1528
  %v1597 = vunpack.c.l.b16 %v1529
  %v1598 = vunpack.c.l.b16 %v1530
  %v1599 = vunpack.c.l.b16 %v1531
  %v1600 = vunpack.c.l.b16 %v1532
  %v1601 = vunpack.c.l.b16 %v1533
  %v1602 = vunpack.c.l.b16 %v1534
  %v1603 = vunpack.c.l.b16 %v1535
  %v1604 = vunpack.c.l.b16 %v1536
  %v1605 = vunpack.c.l.b16 %v1537
  %v1606 = vunpack.c.l.b16 %v1538
  %v1607 = vunpack.c.l.b16 %v1539
  %v1608 = vunpack.c.l.b16 %v1540
  %v1609 = vunpack.c.l.b16 %v1541
  %v1610 = vunpack.c.l.b16 %v1542
  %v1611 = vunpack.c.l.b16 %v1543
  %v1612 = vunpack.c.l.b16 %v1544
  %v1613 = vunpack.c.l.b16 %v1545
  %v1614 = vunpack.c.l.b16 %v1546
  %v1615 = vunpack.c.l.b16 %v1547
  %v1616 = vunpack.c.l.b16 %v1548
  %v1617 = vunpack.c.l.b16 %v1549
  %v1618 = vunpack.c.l.b16 %v1550
  %v1619 = vunpack.c.l.b16 %v1551
  %v1620 = vunpack.c.l.b16 %v1552
  %v1621 = vunpack.c.l.b16 %v1553
  %v1622 = vunpack.c.l.b16 %v1554
  %v1623 = vpack.c.b16 %v1592, %v1591
  %v1624 = vpack.c.b16 %v1594, %v1593
  %v1625 = vpack.c.b16 %v1596, %v1595
  %v1626 = vpack.c.b16 %v1598, %v1597
  %v1627 = vpack.c.b16 %v1600, %v1599
  %v1628 = vpack.c.b16 %v1602, %v1601
  %v1629 = vpack.c.b16 %v1604, %v1603
  %v1630 = vpack.c.b16 %v1606, %v1605
  %v1631 = vpack.c.b16 %v1608, %v1607
  %v1632 = vpack.c.b16 %v1610, %v1609
  %v1633 = vpack.c.b16 %v1612, %v1611
  %v1634 = vpack.c.b16 %v1614, %v1613
  %v1635 = vpack.c.b16 %v1616, %v1615
  %v1636 = vpack.c.b16 %v1618, %v1617
  %v1637 = vpack.c.b16 %v1620, %v1619
  %v1638 = vpack.c.b16 %v1622, %v1621
  %1655 = vmatpush.bf16.msra.mxu0 %v1630
  %1656 = vmatpush.bf16.msra.mxu0 %v1629
  %1657 = vmatpush.bf16.msra.mxu0 %v1628
  %1658 = vmatpush.bf16.msra.mxu0 %v1627
  %1659 = vmatpush.bf16.msra.mxu0 %v1626
  %1660 = vmatpush.bf16.msra.mxu0 %v1625
  %1661 = vmatpush.bf16.msra.mxu0 %v1624
  %1662 = vmatpush.bf16.msra.mxu0 %v1623
  %1663 = vmatmul.bf16.gmra.mxu0 %v1491
  %v1664 = vpop.f32.mrf.mxu0
  %v1665 = vadd.f32 %v1557, %v1664
  %v1666 = vpop.f32.mrf.mxu0
  %v1667 = vadd.f32 %v1557, %v1666
  %1668 = vmatmul.bf16.gmra.mxu0 %v1493
  %v1669 = vpop.f32.mrf.mxu0
  %v1670 = vadd.f32 %v1557, %v1669
  %v1671 = vpop.f32.mrf.mxu0
  %v1672 = vadd.f32 %v1557, %v1671
  %1673 = vmatmul.bf16.gmra.mxu0 %v1495
  %v1674 = vpop.f32.mrf.mxu0
  %v1675 = vadd.f32 %v1557, %v1674
  %v1676 = vpop.f32.mrf.mxu0
  %v1677 = vadd.f32 %v1557, %v1676
  %1678 = vmatmul.bf16.gmra.mxu0 %v1497
  %v1679 = vpop.f32.mrf.mxu0
  %v1680 = vadd.f32 %v1557, %v1679
  %v1681 = vpop.f32.mrf.mxu0
  %v1682 = vadd.f32 %v1557, %v1681
  %1683 = vmatmul.bf16.gmra.mxu0 %v1499
  %v1684 = vpop.f32.mrf.mxu0
  %v1685 = vadd.f32 %v1557, %v1684
  %v1686 = vpop.f32.mrf.mxu0
  %v1687 = vadd.f32 %v1557, %v1686
  %1688 = vmatmul.bf16.gmra.mxu0 %v1501
  %v1689 = vpop.f32.mrf.mxu0
  %v1690 = vadd.f32 %v1557, %v1689
  %v1691 = vpop.f32.mrf.mxu0
  %v1692 = vadd.f32 %v1557, %v1691
  %1693 = vmatmul.bf16.gmra.mxu0 %v1503
  %v1694 = vpop.f32.mrf.mxu0
  %v1695 = vadd.f32 %v1557, %v1694
  %v1696 = vpop.f32.mrf.mxu0
  %v1697 = vadd.f32 %v1557, %v1696
  %1698 = vmatmul.bf16.gmra.mxu0 %v1505
  %v1699 = vpop.f32.mrf.mxu0
  %v1700 = vadd.f32 %v1557, %v1699
  %v1701 = vpop.f32.mrf.mxu0
  %v1702 = vadd.f32 %v1557, %v1701
  %1703 = vmatmul.bf16.gmra.mxu0 %v1507
  %v1704 = vpop.f32.mrf.mxu0
  %v1705 = vadd.f32 %v1557, %v1704
  %v1706 = vpop.f32.mrf.mxu0
  %v1707 = vadd.f32 %v1557, %v1706
  %1708 = vmatmul.bf16.gmra.mxu0 %v1509
  %v1709 = vpop.f32.mrf.mxu0
  %v1710 = vadd.f32 %v1557, %v1709
  %v1711 = vpop.f32.mrf.mxu0
  %v1712 = vadd.f32 %v1557, %v1711
  %1713 = vmatmul.bf16.gmra.mxu0 %v1511
  %v1714 = vpop.f32.mrf.mxu0
  %v1715 = vadd.f32 %v1557, %v1714
  %v1716 = vpop.f32.mrf.mxu0
  %v1717 = vadd.f32 %v1557, %v1716
  %1718 = vmatmul.bf16.gmra.mxu0 %v1513
  %v1719 = vpop.f32.mrf.mxu0
  %v1720 = vadd.f32 %v1557, %v1719
  %v1721 = vpop.f32.mrf.mxu0
  %v1722 = vadd.f32 %v1557, %v1721
  %1723 = vmatmul.bf16.gmra.mxu0 %v1515
  %v1724 = vpop.f32.mrf.mxu0
  %v1725 = vadd.f32 %v1557, %v1724
  %v1726 = vpop.f32.mrf.mxu0
  %v1727 = vadd.f32 %v1557, %v1726
  %1728 = vmatmul.bf16.gmra.mxu0 %v1517
  %v1729 = vpop.f32.mrf.mxu0
  %v1730 = vadd.f32 %v1557, %v1729
  %v1731 = vpop.f32.mrf.mxu0
  %v1732 = vadd.f32 %v1557, %v1731
  %1733 = vmatmul.bf16.gmra.mxu0 %v1519
  %v1734 = vpop.f32.mrf.mxu0
  %v1735 = vadd.f32 %v1557, %v1734
  %v1736 = vpop.f32.mrf.mxu0
  %v1737 = vadd.f32 %v1557, %v1736
  %1738 = vmatmul.bf16.gmra.mxu0 %v1521
  %v1739 = vpop.f32.mrf.mxu0
  %v1740 = vadd.f32 %v1557, %v1739
  %v1741 = vpop.f32.mrf.mxu0
  %v1742 = vadd.f32 %v1557, %v1741
  %1743 = vdwg.mxu0
  %1744 = vmatpush.bf16.msra.mxu0 %v1638
  %1745 = vmatpush.bf16.msra.mxu0 %v1637
  %1746 = vmatpush.bf16.msra.mxu0 %v1636
  %1747 = vmatpush.bf16.msra.mxu0 %v1635
  %1748 = vmatpush.bf16.msra.mxu0 %v1634
  %1749 = vmatpush.bf16.msra.mxu0 %v1633
  %1750 = vmatpush.bf16.msra.mxu0 %v1632
  %1751 = vmatpush.bf16.msra.mxu0 %v1631
  %1752 = vmatmul.bf16.gmra.mxu0 %v1492
  %v1753 = vpop.f32.mrf.mxu0
  %v1754 = vadd.f32 %v1665, %v1753
  %v1755 = vpop.f32.mrf.mxu0
  %v1756 = vadd.f32 %v1667, %v1755
  %1757 = vmatmul.bf16.gmra.mxu0 %v1494
  %v1758 = vpop.f32.mrf.mxu0
  %v1759 = vadd.f32 %v1670, %v1758
  %v1760 = vpop.f32.mrf.mxu0
  %v1761 = vadd.f32 %v1672, %v1760
  %1762 = vmatmul.bf16.gmra.mxu0 %v1496
  %v1763 = vpop.f32.mrf.mxu0
  %v1764 = vadd.f32 %v1675, %v1763
  %v1765 = vpop.f32.mrf.mxu0
  %v1766 = vadd.f32 %v1677, %v1765
  %1767 = vmatmul.bf16.gmra.mxu0 %v1498
  %v1768 = vpop.f32.mrf.mxu0
  %v1769 = vadd.f32 %v1680, %v1768
  %v1770 = vpop.f32.mrf.mxu0
  %v1771 = vadd.f32 %v1682, %v1770
  %1772 = vmatmul.bf16.gmra.mxu0 %v1500
  %v1773 = vpop.f32.mrf.mxu0
  %v1774 = vadd.f32 %v1685, %v1773
  %v1775 = vpop.f32.mrf.mxu0
  %v1776 = vadd.f32 %v1687, %v1775
  %1777 = vmatmul.bf16.gmra.mxu0 %v1502
  %v1778 = vpop.f32.mrf.mxu0
  %v1779 = vadd.f32 %v1690, %v1778
  %v1780 = vpop.f32.mrf.mxu0
  %v1781 = vadd.f32 %v1692, %v1780
  %1782 = vmatmul.bf16.gmra.mxu0 %v1504
  %v1783 = vpop.f32.mrf.mxu0
  %v1784 = vadd.f32 %v1695, %v1783
  %v1785 = vpop.f32.mrf.mxu0
  %v1786 = vadd.f32 %v1697, %v1785
  %1787 = vmatmul.bf16.gmra.mxu0 %v1506
  %v1788 = vpop.f32.mrf.mxu0
  %v1789 = vadd.f32 %v1700, %v1788
  %v1790 = vpop.f32.mrf.mxu0
  %v1791 = vadd.f32 %v1702, %v1790
  %1792 = vmatmul.bf16.gmra.mxu0 %v1508
  %v1793 = vpop.f32.mrf.mxu0
  %v1794 = vadd.f32 %v1705, %v1793
  %v1795 = vpop.f32.mrf.mxu0
  %v1796 = vadd.f32 %v1707, %v1795
  %1797 = vmatmul.bf16.gmra.mxu0 %v1510
  %v1798 = vpop.f32.mrf.mxu0
  %v1799 = vadd.f32 %v1710, %v1798
  %v1800 = vpop.f32.mrf.mxu0
  %v1801 = vadd.f32 %v1712, %v1800
  %1802 = vmatmul.bf16.gmra.mxu0 %v1512
  %v1803 = vpop.f32.mrf.mxu0
  %v1804 = vadd.f32 %v1715, %v1803
  %v1805 = vpop.f32.mrf.mxu0
  %v1806 = vadd.f32 %v1717, %v1805
  %1807 = vmatmul.bf16.gmra.mxu0 %v1514
  %v1808 = vpop.f32.mrf.mxu0
  %v1809 = vadd.f32 %v1720, %v1808
  %v1810 = vpop.f32.mrf.mxu0
  %v1811 = vadd.f32 %v1722, %v1810
  %1812 = vmatmul.bf16.gmra.mxu0 %v1516
  %v1813 = vpop.f32.mrf.mxu0
  %v1814 = vadd.f32 %v1725, %v1813
  %v1815 = vpop.f32.mrf.mxu0
  %v1816 = vadd.f32 %v1727, %v1815
  %1817 = vmatmul.bf16.gmra.mxu0 %v1518
  %v1818 = vpop.f32.mrf.mxu0
  %v1819 = vadd.f32 %v1730, %v1818
  %v1820 = vpop.f32.mrf.mxu0
  %v1821 = vadd.f32 %v1732, %v1820
  %1822 = vmatmul.bf16.gmra.mxu0 %v1520
  %v1823 = vpop.f32.mrf.mxu0
  %v1824 = vadd.f32 %v1735, %v1823
  %v1825 = vpop.f32.mrf.mxu0
  %v1826 = vadd.f32 %v1737, %v1825
  %1827 = vmatmul.bf16.gmra.mxu0 %v1522
  %v1828 = vpop.f32.mrf.mxu0
  %v1829 = vadd.f32 %v1740, %v1828
  %v1830 = vpop.f32.mrf.mxu0
  %v1831 = vadd.f32 %v1742, %v1830
  %1832 = vdwg.mxu0
  %v1833 = vmax.f32 %v1754, 0.0
  %v1834 = vmax.f32 %v1756, 0.0
  %v1835 = vmax.f32 %v1759, 0.0
  %v1836 = vmax.f32 %v1761, 0.0
  %v1837 = vmax.f32 %v1764, 0.0
  %v1838 = vmax.f32 %v1766, 0.0
  %v1839 = vmax.f32 %v1769, 0.0
  %v1840 = vmax.f32 %v1771, 0.0
  %v1841 = vmax.f32 %v1774, 0.0
  %v1842 = vmax.f32 %v1776, 0.0
  %v1843 = vmax.f32 %v1779, 0.0
  %v1844 = vmax.f32 %v1781, 0.0
  %v1845 = vmax.f32 %v1784, 0.0
  %v1846 = vmax.f32 %v1786, 0.0
  %v1847 = vmax.f32 %v1789, 0.0
  %v1848 = vmax.f32 %v1791, 0.0
  %v1849 = vmax.f32 %v1794, 0.0
  %v1850 = vmax.f32 %v1796, 0.0
  %v1851 = vmax.f32 %v1799, 0.0
  %v1852 = vmax.f32 %v1801, 0.0
  %v1853 = vmax.f32 %v1804, 0.0
  %v1854 = vmax.f32 %v1806, 0.0
  %v1855 = vmax.f32 %v1809, 0.0
  %v1856 = vmax.f32 %v1811, 0.0
  %v1857 = vmax.f32 %v1814, 0.0
  %v1858 = vmax.f32 %v1816, 0.0
  %v1859 = vmax.f32 %v1819, 0.0
  %v1860 = vmax.f32 %v1821, 0.0
  %v1861 = vmax.f32 %v1824, 0.0
  %v1862 = vmax.f32 %v1826, 0.0
  %v1863 = vmax.f32 %v1829, 0.0
  %v1864 = vmax.f32 %v1831, 0.0
  %1865 = vst [vmem:[%s8] sm:$0xff] %v1833
  %1866 = vst [vmem:[%s8 + $0x8] sm:$0xff] %v1834
  %1867 = vst [vmem:[%s8 + $0x10] sm:$0xff] %v1835
  %1868 = vst [vmem:[%s8 + $0x18] sm:$0xff] %v1836
  %1869 = vst [vmem:[%s8 + $0x20] sm:$0xff] %v1837
  %1870 = vst [vmem:[%s8 + $0x28] sm:$0xff] %v1838
  %1871 = vst [vmem:[%s8 + $0x30] sm:$0xff] %v1839
  %1872 = vst [vmem:[%s8 + $0x38] sm:$0xff] %v1840
  %1873 = vst [vmem:[%s8 + $0x40] sm:$0xff] %v1841
  %1874 = vst [vmem:[%s8 + $0x48] sm:$0xff] %v1842
  %1875 = vst [vmem:[%s8 + $0x50] sm:$0xff] %v1843
  %1876 = vst [vmem:[%s8 + $0x58] sm:$0xff] %v1844
  %1877 = vst [vmem:[%s8 + $0x60] sm:$0xff] %v1845
  %1878 = vst [vmem:[%s8 + $0x68] sm:$0xff] %v1846
  %1879 = vst [vmem:[%s8 + $0x70] sm:$0xff] %v1847
  %1880 = vst [vmem:[%s8 + $0x78] sm:$0xff] %v1848
  %1881 = vst [vmem:[%s8 + $0x80] sm:$0xff] %v1849
  %1882 = vst [vmem:[%s8 + $0x88] sm:$0xff] %v1850
  %1883 = vst [vmem:[%s8 + $0x90] sm:$0xff] %v1851
  %1884 = vst [vmem:[%s8 + $0x98] sm:$0xff] %v1852
  %1885 = vst [vmem:[%s8 + $0xa0] sm:$0xff] %v1853
  %1886 = vst [vmem:[%s8 + $0xa8] sm:$0xff] %v1854
  %1887 = vst [vmem:[%s8 + $0xb0] sm:$0xff] %v1855
  %1888 = vst [vmem:[%s8 + $0xb8] sm:$0xff] %v1856
  %1889 = vst [vmem:[%s8 + $0xc0] sm:$0xff] %v1857
  %1890 = vst [vmem:[%s8 + $0xc8] sm:$0xff] %v1858
  %1891 = vst [vmem:[%s8 + $0xd0] sm:$0xff] %v1859
  %1892 = vst [vmem:[%s8 + $0xd8] sm:$0xff] %v1860
  %1893 = vst [vmem:[%s8 + $0xe0] sm:$0xff] %v1861
  %1894 = vst [vmem:[%s8 + $0xe8] sm:$0xff] %v1862
  %1895 = vst [vmem:[%s8 + $0xf0] sm:$0xff] %v1863
  %1896 = vst [vmem:[%s8 + $0xf8] sm:$0xff] %v1864
  %v1897 = vpack.c.bf16 %v1834, %v1833
  %v1898 = vpack.c.bf16 %v1836, %v1835
  %v1899 = vpack.c.bf16 %v1838, %v1837
  %v1900 = vpack.c.bf16 %v1840, %v1839
  %v1901 = vpack.c.bf16 %v1842, %v1841
  %v1902 = vpack.c.bf16 %v1844, %v1843
  %v1903 = vpack.c.bf16 %v1846, %v1845
  %v1904 = vpack.c.bf16 %v1848, %v1847
  %v1905 = vpack.c.bf16 %v1850, %v1849
  %v1906 = vpack.c.bf16 %v1852, %v1851
  %v1907 = vpack.c.bf16 %v1854, %v1853
  %v1908 = vpack.c.bf16 %v1856, %v1855
  %v1909 = vpack.c.bf16 %v1858, %v1857
  %v1910 = vpack.c.bf16 %v1860, %v1859
  %v1911 = vpack.c.bf16 %v1862, %v1861
  %v1912 = vpack.c.bf16 %v1864, %v1863
  %v1913 = vld [vmem:[%s7] sm:$0xf]
  %v1914 = vld [vmem:[%s7 + $0x4] sm:$0xf]
  %v1915 = vld [vmem:[%s7 + $0x8] sm:$0xf]
  %v1916 = vld [vmem:[%s7 + $0xc] sm:$0xf]
  %v1917 = vld [vmem:[%s7 + $0x10] sm:$0xf]
  %v1918 = vld [vmem:[%s7 + $0x14] sm:$0xf]
  %v1919 = vld [vmem:[%s7 + $0x18] sm:$0xf]
  %v1920 = vld [vmem:[%s7 + $0x1c] sm:$0xf]
  %v1921 = vld [vmem:[%s7 + $0x20] sm:$0xf]
  %v1922 = vld [vmem:[%s7 + $0x24] sm:$0xf]
  %v1923 = vld [vmem:[%s7 + $0x28] sm:$0xf]
  %v1924 = vld [vmem:[%s7 + $0x2c] sm:$0xf]
  %v1925 = vld [vmem:[%s7 + $0x30] sm:$0xf]
  %v1926 = vld [vmem:[%s7 + $0x34] sm:$0xf]
  %v1927 = vld [vmem:[%s7 + $0x38] sm:$0xf]
  %v1928 = vld [vmem:[%s7 + $0x3c] sm:$0xf]
  %v1945 = vunpack.c.l.b16 %v1913
  %v1946 = vunpack.c.l.b16 %v1914
  %v1947 = vunpack.c.l.b16 %v1915
  %v1948 = vunpack.c.l.b16 %v1916
  %v1949 = vunpack.c.l.b16 %v1917
  %v1950 = vunpack.c.l.b16 %v1918
  %v1951 = vunpack.c.l.b16 %v1919
  %v1952 = vunpack.c.l.b16 %v1920
  %v1953 = vunpack.c.l.b16 %v1921
  %v1954 = vunpack.c.l.b16 %v1922
  %v1955 = vunpack.c.l.b16 %v1923
  %v1956 = vunpack.c.l.b16 %v1924
  %v1957 = vunpack.c.l.b16 %v1925
  %v1958 = vunpack.c.l.b16 %v1926
  %v1959 = vunpack.c.l.b16 %v1927
  %v1960 = vunpack.c.l.b16 %v1928
  %v1961 = vpack.c.b16 %v1946, %v1945
  %v1962 = vpack.c.b16 %v1948, %v1947
  %v1963 = vpack.c.b16 %v1950, %v1949
  %v1964 = vpack.c.b16 %v1952, %v1951
  %v1965 = vpack.c.b16 %v1954, %v1953
  %v1966 = vpack.c.b16 %v1956, %v1955
  %v1967 = vpack.c.b16 %v1958, %v1957
  %v1968 = vpack.c.b16 %v1960, %v1959
  %1977 = vmatpush.bf16.msra.mxu0 %v1968
  %1978 = vmatpush.bf16.msra.mxu0 %v1967
  %1979 = vmatpush.bf16.msra.mxu0 %v1966
  %1980 = vmatpush.bf16.msra.mxu0 %v1965
  %1981 = vmatpush.bf16.msra.mxu0 %v1964
  %1982 = vmatpush.bf16.msra.mxu0 %v1963
  %1983 = vmatpush.bf16.msra.mxu0 %v1962
  %1984 = vmatpush.bf16.msra.mxu0 %v1961
  %1985 = vmatmul.bf16.gmra.mxu0 %v1897
  %v1986 = vpop.f32.mrf.mxu0
  %v1987 = vadd.f32 0.0, %v1986
  %v1988 = vpop.f32.mrf.mxu0
  %v1989 = vadd.f32 0.0, %v1988
  %1990 = vmatmul.bf16.gmra.mxu0 %v1898
  %v1991 = vpop.f32.mrf.mxu0
  %v1992 = vadd.f32 0.0, %v1991
  %v1993 = vpop.f32.mrf.mxu0
  %v1994 = vadd.f32 0.0, %v1993
  %1995 = vmatmul.bf16.gmra.mxu0 %v1899
  %v1996 = vpop.f32.mrf.mxu0
  %v1997 = vadd.f32 0.0, %v1996
  %v1998 = vpop.f32.mrf.mxu0
  %v1999 = vadd.f32 0.0, %v1998
  %2000 = vmatmul.bf16.gmra.mxu0 %v1900
  %v2001 = vpop.f32.mrf.mxu0
  %v2002 = vadd.f32 0.0, %v2001
  %v2003 = vpop.f32.mrf.mxu0
  %v2004 = vadd.f32 0.0, %v2003
  %2005 = vmatmul.bf16.gmra.mxu0 %v1901
  %v2006 = vpop.f32.mrf.mxu0
  %v2007 = vadd.f32 0.0, %v2006
  %v2008 = vpop.f32.mrf.mxu0
  %v2009 = vadd.f32 0.0, %v2008
  %2010 = vmatmul.bf16.gmra.mxu0 %v1902
  %v2011 = vpop.f32.mrf.mxu0
  %v2012 = vadd.f32 0.0, %v2011
  %v2013 = vpop.f32.mrf.mxu0
  %v2014 = vadd.f32 0.0, %v2013
  %2015 = vmatmul.bf16.gmra.mxu0 %v1903
  %v2016 = vpop.f32.mrf.mxu0
  %v2017 = vadd.f32 0.0, %v2016
  %v2018 = vpop.f32.mrf.mxu0
  %v2019 = vadd.f32 0.0, %v2018
  %2020 = vmatmul.bf16.gmra.mxu0 %v1904
  %v2021 = vpop.f32.mrf.mxu0
  %v2022 = vadd.f32 0.0, %v2021
  %v2023 = vpop.f32.mrf.mxu0
  %v2024 = vadd.f32 0.0, %v2023
  %2025 = vmatmul.bf16.gmra.mxu0 %v1905
  %v2026 = vpop.f32.mrf.mxu0
  %v2027 = vadd.f32 0.0, %v2026
  %v2028 = vpop.f32.mrf.mxu0
  %v2029 = vadd.f32 0.0, %v2028
  %2030 = vmatmul.bf16.gmra.mxu0 %v1906
  %v2031 = vpop.f32.mrf.mxu0
  %v2032 = vadd.f32 0.0, %v2031
  %v2033 = vpop.f32.mrf.mxu0
  %v2034 = vadd.f32 0.0, %v2033
  %2035 = vmatmul.bf16.gmra.mxu0 %v1907
  %v2036 = vpop.f32.mrf.mxu0
  %v2037 = vadd.f32 0.0, %v2036
  %v2038 = vpop.f32.mrf.mxu0
  %v2039 = vadd.f32 0.0, %v2038
  %2040 = vmatmul.bf16.gmra.mxu0 %v1908
  %v2041 = vpop.f32.mrf.mxu0
  %v2042 = vadd.f32 0.0, %v2041
  %v2043 = vpop.f32.mrf.mxu0
  %v2044 = vadd.f32 0.0, %v2043
  %2045 = vmatmul.bf16.gmra.mxu0 %v1909
  %v2046 = vpop.f32.mrf.mxu0
  %v2047 = vadd.f32 0.0, %v2046
  %v2048 = vpop.f32.mrf.mxu0
  %v2049 = vadd.f32 0.0, %v2048
  %2050 = vmatmul.bf16.gmra.mxu0 %v1910
  %v2051 = vpop.f32.mrf.mxu0
  %v2052 = vadd.f32 0.0, %v2051
  %v2053 = vpop.f32.mrf.mxu0
  %v2054 = vadd.f32 0.0, %v2053
  %2055 = vmatmul.bf16.gmra.mxu0 %v1911
  %v2056 = vpop.f32.mrf.mxu0
  %v2057 = vadd.f32 0.0, %v2056
  %v2058 = vpop.f32.mrf.mxu0
  %v2059 = vadd.f32 0.0, %v2058
  %2060 = vmatmul.bf16.gmra.mxu0 %v1912
  %v2061 = vpop.f32.mrf.mxu0
  %v2062 = vadd.f32 0.0, %v2061
  %v2063 = vpop.f32.mrf.mxu0
  %v2064 = vadd.f32 0.0, %v2063
  %2065 = vdwg.mxu0
  %2066 = vst [vmem:[%s9] sm:$0xff] %v1987
  %2067 = vst [vmem:[%s9 + $0x8] sm:$0xff] %v1989
  %2068 = vst [vmem:[%s9 + $0x10] sm:$0xff] %v1992
  %2069 = vst [vmem:[%s9 + $0x18] sm:$0xff] %v1994
  %2070 = vst [vmem:[%s9 + $0x20] sm:$0xff] %v1997
  %2071 = vst [vmem:[%s9 + $0x28] sm:$0xff] %v1999
  %2072 = vst [vmem:[%s9 + $0x30] sm:$0xff] %v2002
  %2073 = vst [vmem:[%s9 + $0x38] sm:$0xff] %v2004
  %2074 = vst [vmem:[%s9 + $0x40] sm:$0xff] %v2007
  %2075 = vst [vmem:[%s9 + $0x48] sm:$0xff] %v2009
  %2076 = vst [vmem:[%s9 + $0x50] sm:$0xff] %v2012
  %2077 = vst [vmem:[%s9 + $0x58] sm:$0xff] %v2014
  %2078 = vst [vmem:[%s9 + $0x60] sm:$0xff] %v2017
  %2079 = vst [vmem:[%s9 + $0x68] sm:$0xff] %v2019
  %2080 = vst [vmem:[%s9 + $0x70] sm:$0xff] %v2022
  %2081 = vst [vmem:[%s9 + $0x78] sm:$0xff] %v2024
  %2082 = vst [vmem:[%s9 + $0x80] sm:$0xff] %v2027
  %2083 = vst [vmem:[%s9 + $0x88] sm:$0xff] %v2029
  %2084 = vst [vmem:[%s9 + $0x90] sm:$0xff] %v2032
  %2085 = vst [vmem:[%s9 + $0x98] sm:$0xff] %v2034
  %2086 = vst [vmem:[%s9 + $0xa0] sm:$0xff] %v2037
  %2087 = vst [vmem:[%s9 + $0xa8] sm:$0xff] %v2039
  %2088 = vst [vmem:[%s9 + $0xb0] sm:$0xff] %v2042
  %2089 = vst [vmem:[%s9 + $0xb8] sm:$0xff] %v2044
  %2090 = vst [vmem:[%s9 + $0xc0] sm:$0xff] %v2047
  %2091 = vst [vmem:[%s9 + $0xc8] sm:$0xff] %v2049
  %2092 = vst [vmem:[%s9 + $0xd0] sm:$0xff] %v2052
  %2093 = vst [vmem:[%s9 + $0xd8] sm:$0xff] %v2054
  %2094 = vst [vmem:[%s9 + $0xe0] sm:$0xff] %v2057
  %2095 = vst [vmem:[%s9 + $0xe8] sm:$0xff] %v2059
  %2096 = vst [vmem:[%s9 + $0xf0] sm:$0xff] %v2062
  %2097 = vst [vmem:[%s9 + $0xf8] sm:$0xff] %v2064
  // Predicated region
  $region34: #{asr_forward.2} parent=0 // pred_check
    _
  $region35: #{asr_forward.2} parent=0 // pred_check_branch
    %2099 = sbr.rel (0) target = $region37
  $region36: #{asr_forward.2} parent=0 // pred_region
    _
  $region37: #{asr_forward.2} parent=0 // pred_fallthru
    _
  // Predicated region
  $region38: #{asr_forward.2} parent=0 // pred_check
    _
  $region39: #{asr_forward.2} parent=0 // pred_check_branch
    %2101 = sbr.rel (0) target = $region41
  $region40: #{asr_forward.2} parent=0 // pred_region
    _
  $region41: #{asr_forward.2} parent=0 // pred_fallthru
    _
  // Predicated region
  $region42: #{asr_forward.2} parent=0 // pred_check
    _
  $region43: #{asr_forward.2} parent=0 // pred_check_branch
    %2103 = sbr.rel (0) target = $region45
  $region44: #{asr_forward.2} parent=0 // pred_region
    _
  $region45: #{asr_forward.2} parent=0 // pred_fallthru
    _
  // Predicated region
  $region46: #{asr_forward.2} parent=0 // pred_check
    _
  $region47: #{asr_forward.2} parent=0 // pred_check_branch
    %2105 = sbr.rel (0) target = $region49
  $region48: #{asr_forward.2} parent=0 // pred_region
    _
  $region49: #{asr_forward.2} parent=0 // pred_fallthru
    _

</llo_original>
